<compile_context>
chip_gen: v7x
topology: tpu7x:2x2x1
jax: 0.10.0
libtpu: 0.0.40
codegen_flags: <defaults>
</compile_context>

<pallas_src>
import numpy as np
import jax
import jax.numpy as jnp
from jax.experimental import pallas as pl
from jax.experimental.pallas import tpu as pltpu  # noqa: F401  (kept for clarity / future tuning)

# ----------------------------- small config ---------------------------------
B       = 16          # batch size
NUM_EXP = 16          # expression feature dim   (module: num_exp)
HID_EXP = [64, 48]    # module: hid_dims_exp
NUM_EMB = 24          # text feature dim          (module: num_emb)
HID_EMB = [64, 48]    # module: hid_dims_emb
D       = 32          # module: output_dim
H       = 4           # module: num_heads
HD      = D // H      # head dim
N_GENES = 12          # rows of gene_hetero_emb
KG_DIM  = 20          # gene_hetero_emb.shape[1]
N_OUT   = 1           # module: n_output
LANES   = 128         # TPU lane width; every slab row / activation is 128 wide

DIMS_EXP = [NUM_EXP] + HID_EXP + [D]
DIMS_EMB = [NUM_EMB] + HID_EMB + [D]

assert NUM_EXP + NUM_EMB + KG_DIM <= LANES
assert B % 8 == 0, "batch must be a multiple of 8 for aligned sublane slicing"

# --------------------------- weight-slab layout ------------------------------
# Every weight matrix is stored as a [128, 128] block (rows = input features,
# lanes = output features, zero padded); every bias as an 8-row block with the
# data in row 0.  All offsets are multiples of 8 -> static slices are aligned.
_W_NAMES = ["w_exp0", "w_exp1", "w_exp2",
            "w_emb0", "w_emb1", "w_emb2",
            "w_kg",
            "wq", "wk", "wv", "wo",
            "hmask", "hmask_t",
            "w1a", "w1b", "w1c",
            "w2", "w3", "wout"]
_B_NAMES = ["b_exp0", "b_exp1", "b_exp2",
            "b_emb0", "b_emb1", "b_emb2",
            "b_kg",
            "bq", "bk", "bv", "bo",
            "b1", "b2", "b3", "bout"]


def _build_layout():
    layout, off = {}, 0
    for n in _W_NAMES:
        layout[n] = (off, LANES)
        off += LANES
    for n in _B_NAMES:
        layout[n] = (off, 8)
        off += 8
    return layout, off


LAYOUT, SLAB_ROWS = _build_layout()


# ------------------------------- kernel -------------------------------------
def prekg_kernel(x_ref, slab_ref, o_ref):
    def wmat(name):
        off, rows = LAYOUT[name]
        return slab_ref[off:off + rows, :]          # [128, 128] static view

    def bvec(name):
        off, _ = LAYOUT[name]
        return slab_ref[off:off + 1, :]             # [1, 128]

    def lin(x, wn, bn):
        return jnp.dot(x, wmat(wn), preferred_element_type=jnp.float32) + bvec(bn)

    relu = lambda t: jnp.maximum(t, 0.0)

    x_in = x_ref[...]                               # [B, 128] packed (exp|emb|kg|0)

    # --- three input branches (dropout == identity at inference) ---
    xe = relu(lin(x_in, "w_exp0", "b_exp0"))
    xe = relu(lin(xe,   "w_exp1", "b_exp1"))
    xe = relu(lin(xe,   "w_exp2", "b_exp2"))

    xm = relu(lin(x_in, "w_emb0", "b_emb0"))
    xm = relu(lin(xm,   "w_emb1", "b_emb1"))
    xm = relu(lin(xm,   "w_emb2", "b_emb2"))

    xk = relu(lin(x_in, "w_kg", "b_kg"))

    # --- multi-head self-attention over the 3-token sequence ---
    tok = jnp.concatenate([xe, xm, xk], axis=0)     # [3B, 128] sublane-stacked

    q_all = lin(tok, "wq", "bq")                    # 1/sqrt(HD) folded into wq/bq
    k_all = lin(tok, "wk", "bk")
    v_all = lin(tok, "wv", "bv")

    q = [q_all[i * B:(i + 1) * B, :] for i in range(3)]
    k = [k_all[i * B:(i + 1) * B, :] for i in range(3)]
    v = [v_all[i * B:(i + 1) * B, :] for i in range(3)]

    # per-head scores for all 9 (query, key) pairs in one MXU call
    qk = jnp.concatenate([q[i] * k[j] for i in range(3) for j in range(3)],
                         axis=0)                                             # [9B, 128]
    s_all = jnp.dot(qk, wmat("hmask"), preferred_element_type=jnp.float32)    # [9B, 128]
    s = [[s_all[(3 * i + j) * B:(3 * i + j + 1) * B, :] for j in range(3)]
         for i in range(3)]

    # softmax over the 3 keys (per query, per head; heads live in lanes 0..H-1)
    p_list = []
    for i in range(3):
        m = jnp.maximum(jnp.maximum(s[i][0], s[i][1]), s[i][2])
        e = [jnp.exp(s[i][j] - m) for j in range(3)]
        inv = pl.reciprocal(e[0] + e[1] + e[2], approx=True)
        p_list += [e[j] * inv for j in range(3)]

    # broadcast each head's probability to its HD lanes (one MXU call for all 9)
    p_all = jnp.concatenate(p_list, axis=0)                                   # [9B, 128]
    wfull = jnp.dot(p_all, wmat("hmask_t"), preferred_element_type=jnp.float32)

    attn = [
        wfull[(3 * i + 0) * B:(3 * i + 1) * B, :] * v[0]
        + wfull[(3 * i + 1) * B:(3 * i + 2) * B, :] * v[1]
        + wfull[(3 * i + 2) * B:(3 * i + 3) * B, :] * v[2]
        for i in range(3)
    ]
    attn_all = jnp.concatenate(attn, axis=0)                                  # [3B, 128]

    y_all = tok + lin(attn_all, "wo", "bo")        # residual, one wo dot
    y = [y_all[i * B:(i + 1) * B, :] for i in range(3)]

    # --- fused head: fc1 as three partial dots (no lane-axis concat) ---
    h1 = relu(jnp.dot(y[0], wmat("w1a"), preferred_element_type=jnp.float32)
              + jnp.dot(y[1], wmat("w1b"), preferred_element_type=jnp.float32)
              + jnp.dot(y[2], wmat("w1c"), preferred_element_type=jnp.float32)
              + bvec("b1"))
    h2 = relu(lin(h1, "w2", "b2"))
    h3 = relu(lin(h2, "w3", "b3"))
    o_ref[...] = lin(h3, "wout", "bout")           # [B, 128]; lane 0 is the output


# ------------------------------ parameters ----------------------------------
def init_params(key):
    p = {}

    def dense(k, fin, fout):
        kw, kb = jax.random.split(k)
        w = jax.random.normal(kw, (fin, fout), jnp.float32) / np.sqrt(fin)
        b = jax.random.normal(kb, (1, fout), jnp.float32) * 0.01
        return w, b

    keys = jax.random.split(key, 20)
    ki = iter(keys)

    for li in range(len(DIMS_EXP) - 1):
        p[f"we{li}"], p[f"be{li}"] = dense(next(ki), DIMS_EXP[li], DIMS_EXP[li + 1])
    for li in range(len(DIMS_EMB) - 1):
        p[f"wm{li}"], p[f"bm{li}"] = dense(next(ki), DIMS_EMB[li], DIMS_EMB[li + 1])
    p["wkg"], p["bkg"] = dense(next(ki), KG_DIM, D)
    p["wq"], p["bq"] = dense(next(ki), D, D)
    p["wk"], p["bk"] = dense(next(ki), D, D)
    p["wv"], p["bv"] = dense(next(ki), D, D)
    p["wo"], p["bo"] = dense(next(ki), D, D)
    p["w1"], p["b1"] = dense(next(ki), 3 * D, 3 * D)
    p["w2"], p["b2"] = dense(next(ki), 3 * D, 2 * D)
    p["w3"], p["b3"] = dense(next(ki), 2 * D, D)
    p["wout"], p["bout"] = dense(next(ki), D, N_OUT)

    # pre-trained gene embedding table
    p["gene_hetero_emb"] = jax.random.normal(next(ki), (N_GENES, KG_DIM), jnp.float32)
    return p


def pack_params(p):
    """Pack every weight/bias/mask into a single [SLAB_ROWS, 128] f32 slab."""
    slab = np.zeros((SLAB_ROWS, LANES), np.float32)

    def put_w(name, w, row0=0):
        off, _ = LAYOUT[name]
        w = np.asarray(w, np.float32)
        r, c = w.shape
        slab[off + row0:off + row0 + r, :c] = w

    def put_b(name, b):
        off, _ = LAYOUT[name]
        b = np.asarray(b, np.float32).reshape(-1)
        slab[off, :b.shape[0]] = b

    scale = 1.0 / float(np.sqrt(HD))

    # first-layer weights, row-aligned to the packed input layout
    # input lanes: [0:NUM_EXP]=exprs, [NUM_EXP:NUM_EXP+NUM_EMB]=embs, then kg
    put_w("w_exp0", p["we0"], row0=0)
    put_w("w_emb0", p["wm0"], row0=NUM_EXP)
    put_w("w_kg",   p["wkg"], row0=NUM_EXP + NUM_EMB)
    put_b("b_exp0", p["be0"]); put_b("b_emb0", p["bm0"]); put_b("b_kg", p["bkg"])

    put_w("w_exp1", p["we1"]); put_b("b_exp1", p["be1"])
    put_w("w_exp2", p["we2"]); put_b("b_exp2", p["be2"])
    put_w("w_emb1", p["wm1"]); put_b("b_emb1", p["bm1"])
    put_w("w_emb2", p["wm2"]); put_b("b_emb2", p["bm2"])

    # attention projections (q scale folded in at pack time)
    put_w("wq", np.asarray(p["wq"]) * scale); put_b("bq", np.asarray(p["bq"]) * scale)
    put_w("wk", p["wk"]); put_b("bk", p["bk"])
    put_w("wv", p["wv"]); put_b("bv", p["bv"])
    put_w("wo", p["wo"]); put_b("bo", p["bo"])

    # head-membership masks for per-head score reduction / broadcast
    hmask = np.zeros((D, H), np.float32)
    for h in range(H):
        hmask[h * HD:(h + 1) * HD, h] = 1.0
    put_w("hmask", hmask)
    put_w("hmask_t", hmask.T)

    # fused head
    w1 = np.asarray(p["w1"])
    put_w("w1a", w1[0:D, :]); put_w("w1b", w1[D:2 * D, :]); put_w("w1c", w1[2 * D:3 * D, :])
    put_b("b1", p["b1"])
    put_w("w2", p["w2"]); put_b("b2", p["b2"])
    put_w("w3", p["w3"]); put_b("b3", p["b3"])
    put_w("wout", p["wout"]); put_b("bout", p["bout"])

    return jnp.asarray(slab)


# ------------------------------- wrapper -------------------------------------
@jax.jit
def prekg_forward(exprs, embs, gene_idx, gene_hetero_emb, slab):
    # glue: embedding gather + lane packing of the three activations
    x_kg = jnp.take(gene_hetero_emb, gene_idx, axis=0)              # [B, KG_DIM]
    x_in = jnp.concatenate([exprs, embs, x_kg], axis=1)             # [B, 60]
    x_in = jnp.pad(x_in, ((0, 0), (0, LANES - x_in.shape[1])))      # [B, 128]

    out = pl.pallas_call(
        prekg_kernel,
        out_shape=jax.ShapeDtypeStruct((exprs.shape[0], LANES), jnp.float32),
    )(x_in, slab)
    return out[:, :N_OUT]


# --------------------------- pure-JAX reference ------------------------------
def ref_forward(exprs, embs, gene_idx, p):
    relu = lambda t: jnp.maximum(t, 0.0)
    lin = lambda t, w, b: t @ w + b

    xe = exprs
    for li in range(3):
        xe = relu(lin(xe, p[f"we{li}"], p[f"be{li}"]))
    xm = embs
    for li in range(3):
        xm = relu(lin(xm, p[f"wm{li}"], p[f"bm{li}"]))
    xk = jnp.take(p["gene_hetero_emb"], gene_idx, axis=0)
    xk = relu(lin(xk, p["wkg"], p["bkg"]))

    x = jnp.stack([xe, xm, xk], axis=1)                            # [B, 3, D]
    q = lin(x, p["wq"], p["bq"])
    k = lin(x, p["wk"], p["bk"])
    v = lin(x, p["wv"], p["bv"])
    bs = x.shape[0]
    qh = q.reshape(bs, 3, H, HD).transpose(0, 2, 1, 3)
    kh = k.reshape(bs, 3, H, HD).transpose(0, 2, 1, 3)
    vh = v.reshape(bs, 3, H, HD).transpose(0, 2, 1, 3)
    scores = jnp.einsum("bhqd,bhkd->bhqk", qh, kh) / np.sqrt(HD)
    a = jax.nn.softmax(scores, axis=-1)
    o = jnp.einsum("bhqk,bhkd->bhqd", a, vh).transpose(0, 2, 1, 3).reshape(bs, 3, D)
    o = lin(o, p["wo"], p["bo"])
    y = (x + o).reshape(bs, 3 * D)

    h1 = relu(lin(y, p["w1"], p["b1"]))
    h2 = relu(lin(h1, p["w2"], p["b2"]))
    h3 = relu(lin(h2, p["w3"], p["b3"]))
    return lin(h3, p["wout"], p["bout"])


# --------------------------------- main --------------------------------------
if __name__ == "__main__":
    key = jax.random.PRNGKey(0)
    k_par, k_exp, k_emb, k_idx = jax.random.split(key, 4)

    params = init_params(k_par)
    slab = pack_params(params)                       # one-time offline packing

    exprs = jax.random.normal(k_exp, (B, NUM_EXP), jnp.float32)
    embs = jax.random.normal(k_emb, (B, NUM_EMB), jnp.float32)
    gene_idx = jax.random.randint(k_idx, (B,), 0, N_GENES)

    out = prekg_forward(exprs, embs, gene_idx, params["gene_hetero_emb"], slab)
    out = jax.block_until_ready(out)

    ref = jax.block_until_ready(ref_forward(exprs, embs, gene_idx, params))
    np.testing.assert_allclose(np.asarray(out), np.asarray(ref), rtol=2e-2, atol=2e-2)

    # TODO(synk): dropout (module + attention dropout) is identity here (inference).
    print("KERNEL_OK")
</pallas_src>

<mosaic_0001>
module attributes {stable_mosaic.version = 11 : i64} {
  func.func @prekg_kernel(%arg0: memref<16x128xf32, #tpu.memory_space<vmem>>, %arg1: memref<2552x128xf32, #tpu.memory_space<vmem>>, %arg2: memref<16x128xf32, #tpu.memory_space<vmem>>) attributes {dimension_semantics = [], scalar_prefetch = 0 : i64, scratch_operands = 0 : i64, tpu.core_type = #tpu.core_type<tc>} {
    %c0 = arith.constant 0 : index
    %c0_0 = arith.constant 0 : index
    %0 = vector.load %arg0[%c0, %c0_0] : memref<16x128xf32, #tpu.memory_space<vmem>>, vector<16x128xf32>
    %c0_1 = arith.constant 0 : index
    %c0_2 = arith.constant 0 : index
    %1 = vector.load %arg1[%c0_1, %c0_2] : memref<2552x128xf32, #tpu.memory_space<vmem>>, vector<128x128xf32>
    %cst = arith.constant dense<0.000000e+00> : vector<16x128xf32>
    %2 = tpu.matmul %0, %1, %cst {dimension_numbers = #tpu.dot_dimension_numbers<[1], [0], [0], [1], [0, 0, 1, 1], [], []>} : vector<16x128xf32>, vector<128x128xf32>, vector<16x128xf32> -> vector<16x128xf32>
    %c2432 = arith.constant 2432 : index
    %c0_3 = arith.constant 0 : index
    %3 = vector.load %arg1[%c2432, %c0_3] : memref<2552x128xf32, #tpu.memory_space<vmem>>, vector<1x128xf32>
    %4 = vector.broadcast %3 : vector<1x128xf32> to vector<16x128xf32>
    %5 = arith.addf %2, %4 : vector<16x128xf32>
    %cst_4 = arith.constant 0.000000e+00 : f32
    %6 = vector.broadcast %cst_4 : f32 to vector<16x128xf32>
    %7 = arith.maximumf %5, %6 : vector<16x128xf32>
    %c128 = arith.constant 128 : index
    %c0_5 = arith.constant 0 : index
    %8 = vector.load %arg1[%c128, %c0_5] : memref<2552x128xf32, #tpu.memory_space<vmem>>, vector<128x128xf32>
    %cst_6 = arith.constant dense<0.000000e+00> : vector<16x128xf32>
    %9 = tpu.matmul %7, %8, %cst_6 {dimension_numbers = #tpu.dot_dimension_numbers<[1], [0], [0], [1], [0, 0, 1, 1], [], []>} : vector<16x128xf32>, vector<128x128xf32>, vector<16x128xf32> -> vector<16x128xf32>
    %c2440 = arith.constant 2440 : index
    %c0_7 = arith.constant 0 : index
    %10 = vector.load %arg1[%c2440, %c0_7] : memref<2552x128xf32, #tpu.memory_space<vmem>>, vector<1x128xf32>
    %11 = vector.broadcast %10 : vector<1x128xf32> to vector<16x128xf32>
    %12 = arith.addf %9, %11 : vector<16x128xf32>
    %cst_8 = arith.constant 0.000000e+00 : f32
    %13 = vector.broadcast %cst_8 : f32 to vector<16x128xf32>
    %14 = arith.maximumf %12, %13 : vector<16x128xf32>
    %c256 = arith.constant 256 : index
    %c0_9 = arith.constant 0 : index
    %15 = vector.load %arg1[%c256, %c0_9] : memref<2552x128xf32, #tpu.memory_space<vmem>>, vector<128x128xf32>
    %cst_10 = arith.constant dense<0.000000e+00> : vector<16x128xf32>
    %16 = tpu.matmul %14, %15, %cst_10 {dimension_numbers = #tpu.dot_dimension_numbers<[1], [0], [0], [1], [0, 0, 1, 1], [], []>} : vector<16x128xf32>, vector<128x128xf32>, vector<16x128xf32> -> vector<16x128xf32>
    %c2448 = arith.constant 2448 : index
    %c0_11 = arith.constant 0 : index
    %17 = vector.load %arg1[%c2448, %c0_11] : memref<2552x128xf32, #tpu.memory_space<vmem>>, vector<1x128xf32>
    %18 = vector.broadcast %17 : vector<1x128xf32> to vector<16x128xf32>
    %19 = arith.addf %16, %18 : vector<16x128xf32>
    %cst_12 = arith.constant 0.000000e+00 : f32
    %20 = vector.broadcast %cst_12 : f32 to vector<16x128xf32>
    %21 = arith.maximumf %19, %20 : vector<16x128xf32>
    %c384 = arith.constant 384 : index
    %c0_13 = arith.constant 0 : index
    %22 = vector.load %arg1[%c384, %c0_13] : memref<2552x128xf32, #tpu.memory_space<vmem>>, vector<128x128xf32>
    %cst_14 = arith.constant dense<0.000000e+00> : vector<16x128xf32>
    %23 = tpu.matmul %0, %22, %cst_14 {dimension_numbers = #tpu.dot_dimension_numbers<[1], [0], [0], [1], [0, 0, 1, 1], [], []>} : vector<16x128xf32>, vector<128x128xf32>, vector<16x128xf32> -> vector<16x128xf32>
    %c2456 = arith.constant 2456 : index
    %c0_15 = arith.constant 0 : index
    %24 = vector.load %arg1[%c2456, %c0_15] : memref<2552x128xf32, #tpu.memory_space<vmem>>, vector<1x128xf32>
    %25 = vector.broadcast %24 : vector<1x128xf32> to vector<16x128xf32>
    %26 = arith.addf %23, %25 : vector<16x128xf32>
    %cst_16 = arith.constant 0.000000e+00 : f32
    %27 = vector.broadcast %cst_16 : f32 to vector<16x128xf32>
    %28 = arith.maximumf %26, %27 : vector<16x128xf32>
    %c512 = arith.constant 512 : index
    %c0_17 = arith.constant 0 : index
    %29 = vector.load %arg1[%c512, %c0_17] : memref<2552x128xf32, #tpu.memory_space<vmem>>, vector<128x128xf32>
    %cst_18 = arith.constant dense<0.000000e+00> : vector<16x128xf32>
    %30 = tpu.matmul %28, %29, %cst_18 {dimension_numbers = #tpu.dot_dimension_numbers<[1], [0], [0], [1], [0, 0, 1, 1], [], []>} : vector<16x128xf32>, vector<128x128xf32>, vector<16x128xf32> -> vector<16x128xf32>
    %c2464 = arith.constant 2464 : index
    %c0_19 = arith.constant 0 : index
    %31 = vector.load %arg1[%c2464, %c0_19] : memref<2552x128xf32, #tpu.memory_space<vmem>>, vector<1x128xf32>
    %32 = vector.broadcast %31 : vector<1x128xf32> to vector<16x128xf32>
    %33 = arith.addf %30, %32 : vector<16x128xf32>
    %cst_20 = arith.constant 0.000000e+00 : f32
    %34 = vector.broadcast %cst_20 : f32 to vector<16x128xf32>
    %35 = arith.maximumf %33, %34 : vector<16x128xf32>
    %c640 = arith.constant 640 : index
    %c0_21 = arith.constant 0 : index
    %36 = vector.load %arg1[%c640, %c0_21] : memref<2552x128xf32, #tpu.memory_space<vmem>>, vector<128x128xf32>
    %cst_22 = arith.constant dense<0.000000e+00> : vector<16x128xf32>
    %37 = tpu.matmul %35, %36, %cst_22 {dimension_numbers = #tpu.dot_dimension_numbers<[1], [0], [0], [1], [0, 0, 1, 1], [], []>} : vector<16x128xf32>, vector<128x128xf32>, vector<16x128xf32> -> vector<16x128xf32>
    %c2472 = arith.constant 2472 : index
    %c0_23 = arith.constant 0 : index
    %38 = vector.load %arg1[%c2472, %c0_23] : memref<2552x128xf32, #tpu.memory_space<vmem>>, vector<1x128xf32>
    %39 = vector.broadcast %38 : vector<1x128xf32> to vector<16x128xf32>
    %40 = arith.addf %37, %39 : vector<16x128xf32>
    %cst_24 = arith.constant 0.000000e+00 : f32
    %41 = vector.broadcast %cst_24 : f32 to vector<16x128xf32>
    %42 = arith.maximumf %40, %41 : vector<16x128xf32>
    %c768 = arith.constant 768 : index
    %c0_25 = arith.constant 0 : index
    %43 = vector.load %arg1[%c768, %c0_25] : memref<2552x128xf32, #tpu.memory_space<vmem>>, vector<128x128xf32>
    %cst_26 = arith.constant dense<0.000000e+00> : vector<16x128xf32>
    %44 = tpu.matmul %0, %43, %cst_26 {dimension_numbers = #tpu.dot_dimension_numbers<[1], [0], [0], [1], [0, 0, 1, 1], [], []>} : vector<16x128xf32>, vector<128x128xf32>, vector<16x128xf32> -> vector<16x128xf32>
    %c2480 = arith.constant 2480 : index
    %c0_27 = arith.constant 0 : index
    %45 = vector.load %arg1[%c2480, %c0_27] : memref<2552x128xf32, #tpu.memory_space<vmem>>, vector<1x128xf32>
    %46 = vector.broadcast %45 : vector<1x128xf32> to vector<16x128xf32>
    %47 = arith.addf %44, %46 : vector<16x128xf32>
    %cst_28 = arith.constant 0.000000e+00 : f32
    %48 = vector.broadcast %cst_28 : f32 to vector<16x128xf32>
    %49 = arith.maximumf %47, %48 : vector<16x128xf32>
    %50 = tpu.concatenate %21, %42, %49 in 0 : vector<16x128xf32>, vector<16x128xf32>, vector<16x128xf32> -> vector<48x128xf32>
    %c896 = arith.constant 896 : index
    %c0_29 = arith.constant 0 : index
    %51 = vector.load %arg1[%c896, %c0_29] : memref<2552x128xf32, #tpu.memory_space<vmem>>, vector<128x128xf32>
    %cst_30 = arith.constant dense<0.000000e+00> : vector<48x128xf32>
    %52 = tpu.matmul %50, %51, %cst_30 {dimension_numbers = #tpu.dot_dimension_numbers<[1], [0], [0], [1], [0, 0, 1, 1], [], []>} : vector<48x128xf32>, vector<128x128xf32>, vector<48x128xf32> -> vector<48x128xf32>
    %c2488 = arith.constant 2488 : index
    %c0_31 = arith.constant 0 : index
    %53 = vector.load %arg1[%c2488, %c0_31] : memref<2552x128xf32, #tpu.memory_space<vmem>>, vector<1x128xf32>
    %54 = vector.broadcast %53 : vector<1x128xf32> to vector<48x128xf32>
    %55 = arith.addf %52, %54 : vector<48x128xf32>
    %c1024 = arith.constant 1024 : index
    %c0_32 = arith.constant 0 : index
    %56 = vector.load %arg1[%c1024, %c0_32] : memref<2552x128xf32, #tpu.memory_space<vmem>>, vector<128x128xf32>
    %cst_33 = arith.constant dense<0.000000e+00> : vector<48x128xf32>
    %57 = tpu.matmul %50, %56, %cst_33 {dimension_numbers = #tpu.dot_dimension_numbers<[1], [0], [0], [1], [0, 0, 1, 1], [], []>} : vector<48x128xf32>, vector<128x128xf32>, vector<48x128xf32> -> vector<48x128xf32>
    %c2496 = arith.constant 2496 : index
    %c0_34 = arith.constant 0 : index
    %58 = vector.load %arg1[%c2496, %c0_34] : memref<2552x128xf32, #tpu.memory_space<vmem>>, vector<1x128xf32>
    %59 = vector.broadcast %58 : vector<1x128xf32> to vector<48x128xf32>
    %60 = arith.addf %57, %59 : vector<48x128xf32>
    %c1152 = arith.constant 1152 : index
    %c0_35 = arith.constant 0 : index
    %61 = vector.load %arg1[%c1152, %c0_35] : memref<2552x128xf32, #tpu.memory_space<vmem>>, vector<128x128xf32>
    %cst_36 = arith.constant dense<0.000000e+00> : vector<48x128xf32>
    %62 = tpu.matmul %50, %61, %cst_36 {dimension_numbers = #tpu.dot_dimension_numbers<[1], [0], [0], [1], [0, 0, 1, 1], [], []>} : vector<48x128xf32>, vector<128x128xf32>, vector<48x128xf32> -> vector<48x128xf32>
    %c2504 = arith.constant 2504 : index
    %c0_37 = arith.constant 0 : index
    %63 = vector.load %arg1[%c2504, %c0_37] : memref<2552x128xf32, #tpu.memory_space<vmem>>, vector<1x128xf32>
    %64 = vector.broadcast %63 : vector<1x128xf32> to vector<48x128xf32>
    %65 = arith.addf %62, %64 : vector<48x128xf32>
    %66 = vector.extract_strided_slice %55 {offsets = [0, 0], sizes = [16, 128], strides = [1, 1]} : vector<48x128xf32> to vector<16x128xf32>
    %67 = vector.extract_strided_slice %55 {offsets = [16, 0], sizes = [16, 128], strides = [1, 1]} : vector<48x128xf32> to vector<16x128xf32>
    %68 = vector.extract_strided_slice %55 {offsets = [32, 0], sizes = [16, 128], strides = [1, 1]} : vector<48x128xf32> to vector<16x128xf32>
    %69 = vector.extract_strided_slice %60 {offsets = [0, 0], sizes = [16, 128], strides = [1, 1]} : vector<48x128xf32> to vector<16x128xf32>
    %70 = vector.extract_strided_slice %60 {offsets = [16, 0], sizes = [16, 128], strides = [1, 1]} : vector<48x128xf32> to vector<16x128xf32>
    %71 = vector.extract_strided_slice %60 {offsets = [32, 0], sizes = [16, 128], strides = [1, 1]} : vector<48x128xf32> to vector<16x128xf32>
    %72 = vector.extract_strided_slice %65 {offsets = [0, 0], sizes = [16, 128], strides = [1, 1]} : vector<48x128xf32> to vector<16x128xf32>
    %73 = vector.extract_strided_slice %65 {offsets = [16, 0], sizes = [16, 128], strides = [1, 1]} : vector<48x128xf32> to vector<16x128xf32>
    %74 = vector.extract_strided_slice %65 {offsets = [32, 0], sizes = [16, 128], strides = [1, 1]} : vector<48x128xf32> to vector<16x128xf32>
    %75 = arith.mulf %66, %69 : vector<16x128xf32>
    %76 = arith.mulf %66, %70 : vector<16x128xf32>
    %77 = arith.mulf %66, %71 : vector<16x128xf32>
    %78 = arith.mulf %67, %69 : vector<16x128xf32>
    %79 = arith.mulf %67, %70 : vector<16x128xf32>
    %80 = arith.mulf %67, %71 : vector<16x128xf32>
    %81 = arith.mulf %68, %69 : vector<16x128xf32>
    %82 = arith.mulf %68, %70 : vector<16x128xf32>
    %83 = arith.mulf %68, %71 : vector<16x128xf32>
    %84 = tpu.concatenate %75, %76, %77, %78, %79, %80, %81, %82, %83 in 0 : vector<16x128xf32>, vector<16x128xf32>, vector<16x128xf32>, vector<16x128xf32>, vector<16x128xf32>, vector<16x128xf32>, vector<16x128xf32>, vector<16x128xf32>, vector<16x128xf32> -> vector<144x128xf32>
    %c1408 = arith.constant 1408 : index
    %c0_38 = arith.constant 0 : index
    %85 = vector.load %arg1[%c1408, %c0_38] : memref<2552x128xf32, #tpu.memory_space<vmem>>, vector<128x128xf32>
    %cst_39 = arith.constant dense<0.000000e+00> : vector<144x128xf32>
    %86 = tpu.matmul %84, %85, %cst_39 {dimension_numbers = #tpu.dot_dimension_numbers<[1], [0], [0], [1], [0, 0, 1, 1], [], []>} : vector<144x128xf32>, vector<128x128xf32>, vector<144x128xf32> -> vector<144x128xf32>
    %87 = vector.extract_strided_slice %86 {offsets = [0, 0], sizes = [16, 128], strides = [1, 1]} : vector<144x128xf32> to vector<16x128xf32>
    %88 = vector.extract_strided_slice %86 {offsets = [16, 0], sizes = [16, 128], strides = [1, 1]} : vector<144x128xf32> to vector<16x128xf32>
    %89 = vector.extract_strided_slice %86 {offsets = [32, 0], sizes = [16, 128], strides = [1, 1]} : vector<144x128xf32> to vector<16x128xf32>
    %90 = vector.extract_strided_slice %86 {offsets = [48, 0], sizes = [16, 128], strides = [1, 1]} : vector<144x128xf32> to vector<16x128xf32>
    %91 = vector.extract_strided_slice %86 {offsets = [64, 0], sizes = [16, 128], strides = [1, 1]} : vector<144x128xf32> to vector<16x128xf32>
    %92 = vector.extract_strided_slice %86 {offsets = [80, 0], sizes = [16, 128], strides = [1, 1]} : vector<144x128xf32> to vector<16x128xf32>
    %93 = vector.extract_strided_slice %86 {offsets = [96, 0], sizes = [16, 128], strides = [1, 1]} : vector<144x128xf32> to vector<16x128xf32>
    %94 = vector.extract_strided_slice %86 {offsets = [112, 0], sizes = [16, 128], strides = [1, 1]} : vector<144x128xf32> to vector<16x128xf32>
    %95 = vector.extract_strided_slice %86 {offsets = [128, 0], sizes = [16, 128], strides = [1, 1]} : vector<144x128xf32> to vector<16x128xf32>
    %96 = arith.maximumf %87, %88 : vector<16x128xf32>
    %97 = arith.maximumf %96, %89 : vector<16x128xf32>
    %98 = arith.subf %87, %97 : vector<16x128xf32>
    %99 = math.exp %98 : vector<16x128xf32>
    %100 = arith.subf %88, %97 : vector<16x128xf32>
    %101 = math.exp %100 : vector<16x128xf32>
    %102 = arith.subf %89, %97 : vector<16x128xf32>
    %103 = math.exp %102 : vector<16x128xf32>
    %104 = arith.addf %99, %101 : vector<16x128xf32>
    %105 = arith.addf %104, %103 : vector<16x128xf32>
    %106 = tpu.reciprocal %105 {approx = true} : vector<16x128xf32> -> vector<16x128xf32>
    %107 = arith.mulf %99, %106 : vector<16x128xf32>
    %108 = arith.mulf %101, %106 : vector<16x128xf32>
    %109 = arith.mulf %103, %106 : vector<16x128xf32>
    %110 = arith.maximumf %90, %91 : vector<16x128xf32>
    %111 = arith.maximumf %110, %92 : vector<16x128xf32>
    %112 = arith.subf %90, %111 : vector<16x128xf32>
    %113 = math.exp %112 : vector<16x128xf32>
    %114 = arith.subf %91, %111 : vector<16x128xf32>
    %115 = math.exp %114 : vector<16x128xf32>
    %116 = arith.subf %92, %111 : vector<16x128xf32>
    %117 = math.exp %116 : vector<16x128xf32>
    %118 = arith.addf %113, %115 : vector<16x128xf32>
    %119 = arith.addf %118, %117 : vector<16x128xf32>
    %120 = tpu.reciprocal %119 {approx = true} : vector<16x128xf32> -> vector<16x128xf32>
    %121 = arith.mulf %113, %120 : vector<16x128xf32>
    %122 = arith.mulf %115, %120 : vector<16x128xf32>
    %123 = arith.mulf %117, %120 : vector<16x128xf32>
    %124 = arith.maximumf %93, %94 : vector<16x128xf32>
    %125 = arith.maximumf %124, %95 : vector<16x128xf32>
    %126 = arith.subf %93, %125 : vector<16x128xf32>
    %127 = math.exp %126 : vector<16x128xf32>
    %128 = arith.subf %94, %125 : vector<16x128xf32>
    %129 = math.exp %128 : vector<16x128xf32>
    %130 = arith.subf %95, %125 : vector<16x128xf32>
    %131 = math.exp %130 : vector<16x128xf32>
    %132 = arith.addf %127, %129 : vector<16x128xf32>
    %133 = arith.addf %132, %131 : vector<16x128xf32>
    %134 = tpu.reciprocal %133 {approx = true} : vector<16x128xf32> -> vector<16x128xf32>
    %135 = arith.mulf %127, %134 : vector<16x128xf32>
    %136 = arith.mulf %129, %134 : vector<16x128xf32>
    %137 = arith.mulf %131, %134 : vector<16x128xf32>
    %138 = tpu.concatenate %107, %108, %109, %121, %122, %123, %135, %136, %137 in 0 : vector<16x128xf32>, vector<16x128xf32>, vector<16x128xf32>, vector<16x128xf32>, vector<16x128xf32>, vector<16x128xf32>, vector<16x128xf32>, vector<16x128xf32>, vector<16x128xf32> -> vector<144x128xf32>
    %c1536 = arith.constant 1536 : index
    %c0_40 = arith.constant 0 : index
    %139 = vector.load %arg1[%c1536, %c0_40] : memref<2552x128xf32, #tpu.memory_space<vmem>>, vector<128x128xf32>
    %cst_41 = arith.constant dense<0.000000e+00> : vector<144x128xf32>
    %140 = tpu.matmul %138, %139, %cst_41 {dimension_numbers = #tpu.dot_dimension_numbers<[1], [0], [0], [1], [0, 0, 1, 1], [], []>} : vector<144x128xf32>, vector<128x128xf32>, vector<144x128xf32> -> vector<144x128xf32>
    %141 = vector.extract_strided_slice %140 {offsets = [0, 0], sizes = [16, 128], strides = [1, 1]} : vector<144x128xf32> to vector<16x128xf32>
    %142 = arith.mulf %141, %72 : vector<16x128xf32>
    %143 = vector.extract_strided_slice %140 {offsets = [16, 0], sizes = [16, 128], strides = [1, 1]} : vector<144x128xf32> to vector<16x128xf32>
    %144 = arith.mulf %143, %73 : vector<16x128xf32>
    %145 = arith.addf %142, %144 : vector<16x128xf32>
    %146 = vector.extract_strided_slice %140 {offsets = [32, 0], sizes = [16, 128], strides = [1, 1]} : vector<144x128xf32> to vector<16x128xf32>
    %147 = arith.mulf %146, %74 : vector<16x128xf32>
    %148 = arith.addf %145, %147 : vector<16x128xf32>
    %149 = vector.extract_strided_slice %140 {offsets = [48, 0], sizes = [16, 128], strides = [1, 1]} : vector<144x128xf32> to vector<16x128xf32>
    %150 = arith.mulf %149, %72 : vector<16x128xf32>
    %151 = vector.extract_strided_slice %140 {offsets = [64, 0], sizes = [16, 128], strides = [1, 1]} : vector<144x128xf32> to vector<16x128xf32>
    %152 = arith.mulf %151, %73 : vector<16x128xf32>
    %153 = arith.addf %150, %152 : vector<16x128xf32>
    %154 = vector.extract_strided_slice %140 {offsets = [80, 0], sizes = [16, 128], strides = [1, 1]} : vector<144x128xf32> to vector<16x128xf32>
    %155 = arith.mulf %154, %74 : vector<16x128xf32>
    %156 = arith.addf %153, %155 : vector<16x128xf32>
    %157 = vector.extract_strided_slice %140 {offsets = [96, 0], sizes = [16, 128], strides = [1, 1]} : vector<144x128xf32> to vector<16x128xf32>
    %158 = arith.mulf %157, %72 : vector<16x128xf32>
    %159 = vector.extract_strided_slice %140 {offsets = [112, 0], sizes = [16, 128], strides = [1, 1]} : vector<144x128xf32> to vector<16x128xf32>
    %160 = arith.mulf %159, %73 : vector<16x128xf32>
    %161 = arith.addf %158, %160 : vector<16x128xf32>
    %162 = vector.extract_strided_slice %140 {offsets = [128, 0], sizes = [16, 128], strides = [1, 1]} : vector<144x128xf32> to vector<16x128xf32>
    %163 = arith.mulf %162, %74 : vector<16x128xf32>
    %164 = arith.addf %161, %163 : vector<16x128xf32>
    %165 = tpu.concatenate %148, %156, %164 in 0 : vector<16x128xf32>, vector<16x128xf32>, vector<16x128xf32> -> vector<48x128xf32>
    %c1280 = arith.constant 1280 : index
    %c0_42 = arith.constant 0 : index
    %166 = vector.load %arg1[%c1280, %c0_42] : memref<2552x128xf32, #tpu.memory_space<vmem>>, vector<128x128xf32>
    %cst_43 = arith.constant dense<0.000000e+00> : vector<48x128xf32>
    %167 = tpu.matmul %165, %166, %cst_43 {dimension_numbers = #tpu.dot_dimension_numbers<[1], [0], [0], [1], [0, 0, 1, 1], [], []>} : vector<48x128xf32>, vector<128x128xf32>, vector<48x128xf32> -> vector<48x128xf32>
    %c2512 = arith.constant 2512 : index
    %c0_44 = arith.constant 0 : index
    %168 = vector.load %arg1[%c2512, %c0_44] : memref<2552x128xf32, #tpu.memory_space<vmem>>, vector<1x128xf32>
    %169 = vector.broadcast %168 : vector<1x128xf32> to vector<48x128xf32>
    %170 = arith.addf %167, %169 : vector<48x128xf32>
    %171 = arith.addf %50, %170 : vector<48x128xf32>
    %172 = vector.extract_strided_slice %171 {offsets = [0, 0], sizes = [16, 128], strides = [1, 1]} : vector<48x128xf32> to vector<16x128xf32>
    %173 = vector.extract_strided_slice %171 {offsets = [16, 0], sizes = [16, 128], strides = [1, 1]} : vector<48x128xf32> to vector<16x128xf32>
    %174 = vector.extract_strided_slice %171 {offsets = [32, 0], sizes = [16, 128], strides = [1, 1]} : vector<48x128xf32> to vector<16x128xf32>
    %c1664 = arith.constant 1664 : index
    %c0_45 = arith.constant 0 : index
    %175 = vector.load %arg1[%c1664, %c0_45] : memref<2552x128xf32, #tpu.memory_space<vmem>>, vector<128x128xf32>
    %cst_46 = arith.constant dense<0.000000e+00> : vector<16x128xf32>
    %176 = tpu.matmul %172, %175, %cst_46 {dimension_numbers = #tpu.dot_dimension_numbers<[1], [0], [0], [1], [0, 0, 1, 1], [], []>} : vector<16x128xf32>, vector<128x128xf32>, vector<16x128xf32> -> vector<16x128xf32>
    %c1792 = arith.constant 1792 : index
    %c0_47 = arith.constant 0 : index
    %177 = vector.load %arg1[%c1792, %c0_47] : memref<2552x128xf32, #tpu.memory_space<vmem>>, vector<128x128xf32>
    %cst_48 = arith.constant dense<0.000000e+00> : vector<16x128xf32>
    %178 = tpu.matmul %173, %177, %cst_48 {dimension_numbers = #tpu.dot_dimension_numbers<[1], [0], [0], [1], [0, 0, 1, 1], [], []>} : vector<16x128xf32>, vector<128x128xf32>, vector<16x128xf32> -> vector<16x128xf32>
    %179 = arith.addf %176, %178 : vector<16x128xf32>
    %c1920 = arith.constant 1920 : index
    %c0_49 = arith.constant 0 : index
    %180 = vector.load %arg1[%c1920, %c0_49] : memref<2552x128xf32, #tpu.memory_space<vmem>>, vector<128x128xf32>
    %cst_50 = arith.constant dense<0.000000e+00> : vector<16x128xf32>
    %181 = tpu.matmul %174, %180, %cst_50 {dimension_numbers = #tpu.dot_dimension_numbers<[1], [0], [0], [1], [0, 0, 1, 1], [], []>} : vector<16x128xf32>, vector<128x128xf32>, vector<16x128xf32> -> vector<16x128xf32>
    %182 = arith.addf %179, %181 : vector<16x128xf32>
    %c2520 = arith.constant 2520 : index
    %c0_51 = arith.constant 0 : index
    %183 = vector.load %arg1[%c2520, %c0_51] : memref<2552x128xf32, #tpu.memory_space<vmem>>, vector<1x128xf32>
    %184 = vector.broadcast %183 : vector<1x128xf32> to vector<16x128xf32>
    %185 = arith.addf %182, %184 : vector<16x128xf32>
    %cst_52 = arith.constant 0.000000e+00 : f32
    %186 = vector.broadcast %cst_52 : f32 to vector<16x128xf32>
    %187 = arith.maximumf %185, %186 : vector<16x128xf32>
    %c2048 = arith.constant 2048 : index
    %c0_53 = arith.constant 0 : index
    %188 = vector.load %arg1[%c2048, %c0_53] : memref<2552x128xf32, #tpu.memory_space<vmem>>, vector<128x128xf32>
    %cst_54 = arith.constant dense<0.000000e+00> : vector<16x128xf32>
    %189 = tpu.matmul %187, %188, %cst_54 {dimension_numbers = #tpu.dot_dimension_numbers<[1], [0], [0], [1], [0, 0, 1, 1], [], []>} : vector<16x128xf32>, vector<128x128xf32>, vector<16x128xf32> -> vector<16x128xf32>
    %c2528 = arith.constant 2528 : index
    %c0_55 = arith.constant 0 : index
    %190 = vector.load %arg1[%c2528, %c0_55] : memref<2552x128xf32, #tpu.memory_space<vmem>>, vector<1x128xf32>
    %191 = vector.broadcast %190 : vector<1x128xf32> to vector<16x128xf32>
    %192 = arith.addf %189, %191 : vector<16x128xf32>
    %cst_56 = arith.constant 0.000000e+00 : f32
    %193 = vector.broadcast %cst_56 : f32 to vector<16x128xf32>
    %194 = arith.maximumf %192, %193 : vector<16x128xf32>
    %c2176 = arith.constant 2176 : index
    %c0_57 = arith.constant 0 : index
    %195 = vector.load %arg1[%c2176, %c0_57] : memref<2552x128xf32, #tpu.memory_space<vmem>>, vector<128x128xf32>
    %cst_58 = arith.constant dense<0.000000e+00> : vector<16x128xf32>
    %196 = tpu.matmul %194, %195, %cst_58 {dimension_numbers = #tpu.dot_dimension_numbers<[1], [0], [0], [1], [0, 0, 1, 1], [], []>} : vector<16x128xf32>, vector<128x128xf32>, vector<16x128xf32> -> vector<16x128xf32>
    %c2536 = arith.constant 2536 : index
    %c0_59 = arith.constant 0 : index
    %197 = vector.load %arg1[%c2536, %c0_59] : memref<2552x128xf32, #tpu.memory_space<vmem>>, vector<1x128xf32>
    %198 = vector.broadcast %197 : vector<1x128xf32> to vector<16x128xf32>
    %199 = arith.addf %196, %198 : vector<16x128xf32>
    %cst_60 = arith.constant 0.000000e+00 : f32
    %200 = vector.broadcast %cst_60 : f32 to vector<16x128xf32>
    %201 = arith.maximumf %199, %200 : vector<16x128xf32>
    %c2304 = arith.constant 2304 : index
    %c0_61 = arith.constant 0 : index
    %202 = vector.load %arg1[%c2304, %c0_61] : memref<2552x128xf32, #tpu.memory_space<vmem>>, vector<128x128xf32>
    %cst_62 = arith.constant dense<0.000000e+00> : vector<16x128xf32>
    %203 = tpu.matmul %201, %202, %cst_62 {dimension_numbers = #tpu.dot_dimension_numbers<[1], [0], [0], [1], [0, 0, 1, 1], [], []>} : vector<16x128xf32>, vector<128x128xf32>, vector<16x128xf32> -> vector<16x128xf32>
    %c2544 = arith.constant 2544 : index
    %c0_63 = arith.constant 0 : index
    %204 = vector.load %arg1[%c2544, %c0_63] : memref<2552x128xf32, #tpu.memory_space<vmem>>, vector<1x128xf32>
    %205 = vector.broadcast %204 : vector<1x128xf32> to vector<16x128xf32>
    %206 = arith.addf %203, %205 : vector<16x128xf32>
    %c0_64 = arith.constant 0 : index
    %c0_65 = arith.constant 0 : index
    %207 = vector.load %arg2[%c0_64, %c0_65] : memref<16x128xf32, #tpu.memory_space<vmem>>, vector<16x128xf32>
    tpu.vector_store %arg2[%c0_64, %c0_65], %206 {strides = array<i32>} : memref<16x128xf32, #tpu.memory_space<vmem>>, vector<16x128xf32>,
    return
  }
}

</mosaic_0001>

<llo_original>
// kernel: prekg_forward.1
$region0: #{prekg_forward.1}
  #allocation0 [shape = 'u32[]', space=smem, size = 0x4, offset = 0x4, fixed_abs, tag = 'smem constant byte address 0x4 - core index']
  #allocation1 [shape = 'u32[144,128]{1,0:T(1,128)}', space=vmem, size = 0x12000, scoped, tag = 'internal scratch']
  %s0 = inlined_call_operand.vmem [shape: f32[16,128], index: 0, kind: input, shape index: {}]
  %s1 = inlined_call_operand.hbm [shape: f32[2552,128], index: 1, kind: input, shape index: {}]
  %s2 = inlined_call_operand.vmem [shape: f32[16,128], index: 2, kind: output, shape index: {}]
  %s3 = sld [smem:[#allocation0]]
  $region22: #{prekg_forward.1} parent=0
    _
  %s5 = ssub.s32 1, %s3
  %s6 = scalar_select 0, %s5, %s3
  $region1: #{prekg_forward.1} parent=0
    #allocation2 [shape = 'u8[1306624]{0}', space=vmem, size = 0x13f000, scoped, tag = 'input window, operand 1, single buffered']
    #allocation3 [shape = 's32[1]{0}', space=sflag, size = 0x4, scoped, tag = 'scoped memory for prekg_forward.1']
    %7 = vsyncpa [#allocation3], 0
    // Predicated region
    $region2: #{prekg_forward.1} parent=1 // pred_check
      _
    $region3: #{prekg_forward.1} parent=1 // pred_check_branch
      %9 = sbr.rel (0) target = $region5
    $region4: #{prekg_forward.1} parent=1 // pred_region
      _
    $region5: #{prekg_forward.1} parent=1 // pred_fallthru
      _
    // Predicated region
    $region6: #{prekg_forward.1} parent=1 // pred_check
      _
    $region7: #{prekg_forward.1} parent=1 // pred_check_branch
      %11 = sbr.rel (0) target = $region9
    $region8: #{prekg_forward.1} parent=1 // pred_region
      %s13 = ssub.s32 40832, 40832
      %14 = vsyncadd [#allocation3], %s13
      %s15 = sshll.u32 [#allocation2], 4
      %s16 = int_to_ptr.vmem [resolvable:$true] %s15
      %21 = dma.hbm_to_vmem [thread:$0]  %s1, 40832, %s16, [#allocation3], 128, 128, 8
    $region9: #{prekg_forward.1} parent=1 // pred_fallthru
      _
    // Predicated region
    $region10: #{prekg_forward.1} parent=1 // pred_check
      _
    $region11: #{prekg_forward.1} parent=1 // pred_check_branch
      %23 = sbr.rel (0) target = $region13
    $region12: #{prekg_forward.1} parent=1 // pred_region
      %24 = dma.done [#allocation3], 40832
    $region13: #{prekg_forward.1} parent=1 // pred_fallthru
      _
    %v25 = vld [vmem:[%s0] sm:$0xff]
    %v26 = vld [vmem:[%s0 + $0x8] sm:$0xff]
    %v27 = vld [vmem:[#allocation2] sm:$0xff]
    %v28 = vld [vmem:[#allocation2 + $0x8] sm:$0xff]
    %v29 = vld [vmem:[#allocation2 + $0x10] sm:$0xff]
    %v30 = vld [vmem:[#allocation2 + $0x18] sm:$0xff]
    %v31 = vld [vmem:[#allocation2 + $0x20] sm:$0xff]
    %v32 = vld [vmem:[#allocation2 + $0x28] sm:$0xff]
    %v33 = vld [vmem:[#allocation2 + $0x30] sm:$0xff]
    %v34 = vld [vmem:[#allocation2 + $0x38] sm:$0xff]
    %v35 = vld [vmem:[#allocation2 + $0x40] sm:$0xff]
    %v36 = vld [vmem:[#allocation2 + $0x48] sm:$0xff]
    %v37 = vld [vmem:[#allocation2 + $0x50] sm:$0xff]
    %v38 = vld [vmem:[#allocation2 + $0x58] sm:$0xff]
    %v39 = vld [vmem:[#allocation2 + $0x60] sm:$0xff]
    %v40 = vld [vmem:[#allocation2 + $0x68] sm:$0xff]
    %v41 = vld [vmem:[#allocation2 + $0x70] sm:$0xff]
    %v42 = vld [vmem:[#allocation2 + $0x78] sm:$0xff]
    %v43 = vld [vmem:[#allocation2 + $0x980] sm:$0x1]
    %v44 = vlaneseq
    %v45 = vshrl.u32 %v44, 7
    %v46 = vsub.s32 0, %v45
    %v47 = vrot.slane %v43, %v46
    %48 = vmatprep.subr.mxu0 0.0
    %49 = vmatpush1.msra.mxu0 %v27
    %50 = vmatprep.subr.mxu0 0.0
    %51 = vmatpush1.msra.mxu0 %v28
    %52 = vmatprep.subr.mxu0 0.0
    %53 = vmatpush1.msra.mxu0 %v29
    %54 = vmatprep.subr.mxu0 0.0
    %55 = vmatpush1.msra.mxu0 %v30
    %56 = vmatprep.subr.mxu0 0.0
    %57 = vmatpush1.msra.mxu0 %v31
    %58 = vmatprep.subr.mxu0 0.0
    %59 = vmatpush1.msra.mxu0 %v32
    %60 = vmatprep.subr.mxu0 0.0
    %61 = vmatpush1.msra.mxu0 %v33
    %62 = vmatprep.subr.mxu0 0.0
    %63 = vmatpush1.msra.mxu0 %v34
    %64 = vmatprep.subr.mxu0 0.0
    %65 = vmatpush1.msra.mxu0 %v35
    %66 = vmatprep.subr.mxu0 0.0
    %67 = vmatpush1.msra.mxu0 %v36
    %68 = vmatprep.subr.mxu0 0.0
    %69 = vmatpush1.msra.mxu0 %v37
    %70 = vmatprep.subr.mxu0 0.0
    %71 = vmatpush1.msra.mxu0 %v38
    %72 = vmatprep.subr.mxu0 0.0
    %73 = vmatpush1.msra.mxu0 %v39
    %74 = vmatprep.subr.mxu0 0.0
    %75 = vmatpush1.msra.mxu0 %v40
    %76 = vmatprep.subr.mxu0 0.0
    %77 = vmatpush1.msra.mxu0 %v41
    %78 = vmatprep.subr.mxu0 0.0
    %79 = vmatpush1.msra.mxu0 %v42
    %80 = vmatprep.subr.mxu0 0.0
    %81 = vmatpush1.msra.mxu0 0.0
    %82 = vmatprep.subr.mxu0 0.0
    %83 = vmatpush1.msra.mxu0 0.0
    %84 = vmatprep.subr.mxu0 0.0
    %85 = vmatpush1.msra.mxu0 0.0
    %86 = vmatprep.subr.mxu0 0.0
    %87 = vmatpush1.msra.mxu0 0.0
    %88 = vmatprep.subr.mxu0 0.0
    %89 = vmatpush1.msra.mxu0 0.0
    %90 = vmatprep.subr.mxu0 0.0
    %91 = vmatpush1.msra.mxu0 0.0
    %92 = vmatprep.subr.mxu0 0.0
    %93 = vmatpush1.msra.mxu0 0.0
    %94 = vmatprep.subr.mxu0 0.0
    %95 = vmatpush1.msra.mxu0 0.0
    %96 = vmatprep.subr.mxu0 0.0
    %97 = vmatpush1.msra.mxu0 0.0
    %98 = vmatprep.subr.mxu0 0.0
    %99 = vmatpush1.msra.mxu0 0.0
    %100 = vmatprep.subr.mxu0 0.0
    %101 = vmatpush1.msra.mxu0 0.0
    %102 = vmatprep.subr.mxu0 0.0
    %103 = vmatpush1.msra.mxu0 0.0
    %104 = vmatprep.subr.mxu0 0.0
    %105 = vmatpush1.msra.mxu0 0.0
    %106 = vmatprep.subr.mxu0 0.0
    %107 = vmatpush1.msra.mxu0 0.0
    %108 = vmatprep.subr.mxu0 0.0
    %109 = vmatpush1.msra.mxu0 0.0
    %110 = vmatprep.subr.mxu0 0.0
    %111 = vmatpush1.msra.mxu0 0.0
    %112 = vmatprep.mubr.f32.mxu0 0.0
    %113 = vmatmul.mubr.f32.gmra.mrb[0].mxu0 %v25
    %v114 = vpop.f32.mrb[0].mxu0
    %v115 = vadd.f32 %v47, %v114
    %v116 = vpop.f32.mrb[0].mxu0
    %117 = vmatprep.mubr.f32.mxu0 0.0
    %118 = vmatmul.mubr.f32.gmra.mrb[0].mxu0 %v26
    %v119 = vpop.f32.mrb[0].mxu0
    %v120 = vadd.f32 %v47, %v119
    %v121 = vpop.f32.mrb[0].mxu0
    %122 = vdwg.mxu0
    %v123 = vmax.f32 %v115, 0.0
    %v124 = vmax.f32 %v120, 0.0
    %v125 = vld [vmem:[#allocation2 + $0x80] sm:$0xff]
    %v126 = vld [vmem:[#allocation2 + $0x88] sm:$0xff]
    %v127 = vld [vmem:[#allocation2 + $0x90] sm:$0xff]
    %v128 = vld [vmem:[#allocation2 + $0x98] sm:$0xff]
    %v129 = vld [vmem:[#allocation2 + $0xa0] sm:$0xff]
    %v130 = vld [vmem:[#allocation2 + $0xa8] sm:$0xff]
    %v131 = vld [vmem:[#allocation2 + $0xb0] sm:$0xff]
    %v132 = vld [vmem:[#allocation2 + $0xb8] sm:$0xff]
    %v133 = vld [vmem:[#allocation2 + $0xc0] sm:$0xff]
    %v134 = vld [vmem:[#allocation2 + $0xc8] sm:$0xff]
    %v135 = vld [vmem:[#allocation2 + $0xd0] sm:$0xff]
    %v136 = vld [vmem:[#allocation2 + $0xd8] sm:$0xff]
    %v137 = vld [vmem:[#allocation2 + $0xe0] sm:$0xff]
    %v138 = vld [vmem:[#allocation2 + $0xe8] sm:$0xff]
    %v139 = vld [vmem:[#allocation2 + $0xf0] sm:$0xff]
    %v140 = vld [vmem:[#allocation2 + $0xf8] sm:$0xff]
    %v141 = vld [vmem:[#allocation2 + $0x988] sm:$0x1]
    %v142 = vlaneseq
    %v143 = vshrl.u32 %v142, 7
    %v144 = vsub.s32 0, %v143
    %v145 = vrot.slane %v141, %v144
    %146 = vmatprep.subr.mxu0 0.0
    %147 = vmatpush1.msra.mxu0 %v125
    %148 = vmatprep.subr.mxu0 0.0
    %149 = vmatpush1.msra.mxu0 %v126
    %150 = vmatprep.subr.mxu0 0.0
    %151 = vmatpush1.msra.mxu0 %v127
    %152 = vmatprep.subr.mxu0 0.0
    %153 = vmatpush1.msra.mxu0 %v128
    %154 = vmatprep.subr.mxu0 0.0
    %155 = vmatpush1.msra.mxu0 %v129
    %156 = vmatprep.subr.mxu0 0.0
    %157 = vmatpush1.msra.mxu0 %v130
    %158 = vmatprep.subr.mxu0 0.0
    %159 = vmatpush1.msra.mxu0 %v131
    %160 = vmatprep.subr.mxu0 0.0
    %161 = vmatpush1.msra.mxu0 %v132
    %162 = vmatprep.subr.mxu0 0.0
    %163 = vmatpush1.msra.mxu0 %v133
    %164 = vmatprep.subr.mxu0 0.0
    %165 = vmatpush1.msra.mxu0 %v134
    %166 = vmatprep.subr.mxu0 0.0
    %167 = vmatpush1.msra.mxu0 %v135
    %168 = vmatprep.subr.mxu0 0.0
    %169 = vmatpush1.msra.mxu0 %v136
    %170 = vmatprep.subr.mxu0 0.0
    %171 = vmatpush1.msra.mxu0 %v137
    %172 = vmatprep.subr.mxu0 0.0
    %173 = vmatpush1.msra.mxu0 %v138
    %174 = vmatprep.subr.mxu0 0.0
    %175 = vmatpush1.msra.mxu0 %v139
    %176 = vmatprep.subr.mxu0 0.0
    %177 = vmatpush1.msra.mxu0 %v140
    %178 = vmatprep.subr.mxu0 0.0
    %179 = vmatpush1.msra.mxu0 0.0
    %180 = vmatprep.subr.mxu0 0.0
    %181 = vmatpush1.msra.mxu0 0.0
    %182 = vmatprep.subr.mxu0 0.0
    %183 = vmatpush1.msra.mxu0 0.0
    %184 = vmatprep.subr.mxu0 0.0
    %185 = vmatpush1.msra.mxu0 0.0
    %186 = vmatprep.subr.mxu0 0.0
    %187 = vmatpush1.msra.mxu0 0.0
    %188 = vmatprep.subr.mxu0 0.0
    %189 = vmatpush1.msra.mxu0 0.0
    %190 = vmatprep.subr.mxu0 0.0
    %191 = vmatpush1.msra.mxu0 0.0
    %192 = vmatprep.subr.mxu0 0.0
    %193 = vmatpush1.msra.mxu0 0.0
    %194 = vmatprep.subr.mxu0 0.0
    %195 = vmatpush1.msra.mxu0 0.0
    %196 = vmatprep.subr.mxu0 0.0
    %197 = vmatpush1.msra.mxu0 0.0
    %198 = vmatprep.subr.mxu0 0.0
    %199 = vmatpush1.msra.mxu0 0.0
    %200 = vmatprep.subr.mxu0 0.0
    %201 = vmatpush1.msra.mxu0 0.0
    %202 = vmatprep.subr.mxu0 0.0
    %203 = vmatpush1.msra.mxu0 0.0
    %204 = vmatprep.subr.mxu0 0.0
    %205 = vmatpush1.msra.mxu0 0.0
    %206 = vmatprep.subr.mxu0 0.0
    %207 = vmatpush1.msra.mxu0 0.0
    %208 = vmatprep.subr.mxu0 0.0
    %209 = vmatpush1.msra.mxu0 0.0
    %210 = vmatprep.mubr.f32.mxu0 0.0
    %211 = vmatmul.mubr.f32.gmra.mrb[0].mxu0 %v123
    %v212 = vpop.f32.mrb[0].mxu0
    %v213 = vadd.f32 %v145, %v212
    %v214 = vpop.f32.mrb[0].mxu0
    %215 = vmatprep.mubr.f32.mxu0 0.0
    %216 = vmatmul.mubr.f32.gmra.mrb[0].mxu0 %v124
    %v217 = vpop.f32.mrb[0].mxu0
    %v218 = vadd.f32 %v145, %v217
    %v219 = vpop.f32.mrb[0].mxu0
    %220 = vdwg.mxu0
    %v221 = vmax.f32 %v213, 0.0
    %v222 = vmax.f32 %v218, 0.0
    %v223 = vld [vmem:[#allocation2 + $0x100] sm:$0xff]
    %v224 = vld [vmem:[#allocation2 + $0x108] sm:$0xff]
    %v225 = vld [vmem:[#allocation2 + $0x110] sm:$0xff]
    %v226 = vld [vmem:[#allocation2 + $0x118] sm:$0xff]
    %v227 = vld [vmem:[#allocation2 + $0x120] sm:$0xff]
    %v228 = vld [vmem:[#allocation2 + $0x128] sm:$0xff]
    %v229 = vld [vmem:[#allocation2 + $0x130] sm:$0xff]
    %v230 = vld [vmem:[#allocation2 + $0x138] sm:$0xff]
    %v231 = vld [vmem:[#allocation2 + $0x140] sm:$0xff]
    %v232 = vld [vmem:[#allocation2 + $0x148] sm:$0xff]
    %v233 = vld [vmem:[#allocation2 + $0x150] sm:$0xff]
    %v234 = vld [vmem:[#allocation2 + $0x158] sm:$0xff]
    %v235 = vld [vmem:[#allocation2 + $0x160] sm:$0xff]
    %v236 = vld [vmem:[#allocation2 + $0x168] sm:$0xff]
    %v237 = vld [vmem:[#allocation2 + $0x170] sm:$0xff]
    %v238 = vld [vmem:[#allocation2 + $0x178] sm:$0xff]
    %v239 = vld [vmem:[#allocation2 + $0x990] sm:$0x1]
    %v240 = vlaneseq
    %v241 = vshrl.u32 %v240, 7
    %v242 = vsub.s32 0, %v241
    %v243 = vrot.slane %v239, %v242
    %244 = vmatprep.subr.mxu0 0.0
    %245 = vmatpush1.msra.mxu0 %v223
    %246 = vmatprep.subr.mxu0 0.0
    %247 = vmatpush1.msra.mxu0 %v224
    %248 = vmatprep.subr.mxu0 0.0
    %249 = vmatpush1.msra.mxu0 %v225
    %250 = vmatprep.subr.mxu0 0.0
    %251 = vmatpush1.msra.mxu0 %v226
    %252 = vmatprep.subr.mxu0 0.0
    %253 = vmatpush1.msra.mxu0 %v227
    %254 = vmatprep.subr.mxu0 0.0
    %255 = vmatpush1.msra.mxu0 %v228
    %256 = vmatprep.subr.mxu0 0.0
    %257 = vmatpush1.msra.mxu0 %v229
    %258 = vmatprep.subr.mxu0 0.0
    %259 = vmatpush1.msra.mxu0 %v230
    %260 = vmatprep.subr.mxu0 0.0
    %261 = vmatpush1.msra.mxu0 %v231
    %262 = vmatprep.subr.mxu0 0.0
    %263 = vmatpush1.msra.mxu0 %v232
    %264 = vmatprep.subr.mxu0 0.0
    %265 = vmatpush1.msra.mxu0 %v233
    %266 = vmatprep.subr.mxu0 0.0
    %267 = vmatpush1.msra.mxu0 %v234
    %268 = vmatprep.subr.mxu0 0.0
    %269 = vmatpush1.msra.mxu0 %v235
    %270 = vmatprep.subr.mxu0 0.0
    %271 = vmatpush1.msra.mxu0 %v236
    %272 = vmatprep.subr.mxu0 0.0
    %273 = vmatpush1.msra.mxu0 %v237
    %274 = vmatprep.subr.mxu0 0.0
    %275 = vmatpush1.msra.mxu0 %v238
    %276 = vmatprep.subr.mxu0 0.0
    %277 = vmatpush1.msra.mxu0 0.0
    %278 = vmatprep.subr.mxu0 0.0
    %279 = vmatpush1.msra.mxu0 0.0
    %280 = vmatprep.subr.mxu0 0.0
    %281 = vmatpush1.msra.mxu0 0.0
    %282 = vmatprep.subr.mxu0 0.0
    %283 = vmatpush1.msra.mxu0 0.0
    %284 = vmatprep.subr.mxu0 0.0
    %285 = vmatpush1.msra.mxu0 0.0
    %286 = vmatprep.subr.mxu0 0.0
    %287 = vmatpush1.msra.mxu0 0.0
    %288 = vmatprep.subr.mxu0 0.0
    %289 = vmatpush1.msra.mxu0 0.0
    %290 = vmatprep.subr.mxu0 0.0
    %291 = vmatpush1.msra.mxu0 0.0
    %292 = vmatprep.subr.mxu0 0.0
    %293 = vmatpush1.msra.mxu0 0.0
    %294 = vmatprep.subr.mxu0 0.0
    %295 = vmatpush1.msra.mxu0 0.0
    %296 = vmatprep.subr.mxu0 0.0
    %297 = vmatpush1.msra.mxu0 0.0
    %298 = vmatprep.subr.mxu0 0.0
    %299 = vmatpush1.msra.mxu0 0.0
    %300 = vmatprep.subr.mxu0 0.0
    %301 = vmatpush1.msra.mxu0 0.0
    %302 = vmatprep.subr.mxu0 0.0
    %303 = vmatpush1.msra.mxu0 0.0
    %304 = vmatprep.subr.mxu0 0.0
    %305 = vmatpush1.msra.mxu0 0.0
    %306 = vmatprep.subr.mxu0 0.0
    %307 = vmatpush1.msra.mxu0 0.0
    %308 = vmatprep.mubr.f32.mxu0 0.0
    %309 = vmatmul.mubr.f32.gmra.mrb[0].mxu0 %v221
    %v310 = vpop.f32.mrb[0].mxu0
    %v311 = vadd.f32 %v243, %v310
    %v312 = vpop.f32.mrb[0].mxu0
    %313 = vmatprep.mubr.f32.mxu0 0.0
    %314 = vmatmul.mubr.f32.gmra.mrb[0].mxu0 %v222
    %v315 = vpop.f32.mrb[0].mxu0
    %v316 = vadd.f32 %v243, %v315
    %v317 = vpop.f32.mrb[0].mxu0
    %318 = vdwg.mxu0
    %v319 = vmax.f32 %v311, 0.0
    %v320 = vmax.f32 %v316, 0.0
    %v321 = vld [vmem:[#allocation2 + $0x180] sm:$0xff]
    %v322 = vld [vmem:[#allocation2 + $0x188] sm:$0xff]
    %v323 = vld [vmem:[#allocation2 + $0x190] sm:$0xff]
    %v324 = vld [vmem:[#allocation2 + $0x198] sm:$0xff]
    %v325 = vld [vmem:[#allocation2 + $0x1a0] sm:$0xff]
    %v326 = vld [vmem:[#allocation2 + $0x1a8] sm:$0xff]
    %v327 = vld [vmem:[#allocation2 + $0x1b0] sm:$0xff]
    %v328 = vld [vmem:[#allocation2 + $0x1b8] sm:$0xff]
    %v329 = vld [vmem:[#allocation2 + $0x1c0] sm:$0xff]
    %v330 = vld [vmem:[#allocation2 + $0x1c8] sm:$0xff]
    %v331 = vld [vmem:[#allocation2 + $0x1d0] sm:$0xff]
    %v332 = vld [vmem:[#allocation2 + $0x1d8] sm:$0xff]
    %v333 = vld [vmem:[#allocation2 + $0x1e0] sm:$0xff]
    %v334 = vld [vmem:[#allocation2 + $0x1e8] sm:$0xff]
    %v335 = vld [vmem:[#allocation2 + $0x1f0] sm:$0xff]
    %v336 = vld [vmem:[#allocation2 + $0x1f8] sm:$0xff]
    %v337 = vld [vmem:[#allocation2 + $0x998] sm:$0x1]
    %v338 = vlaneseq
    %v339 = vshrl.u32 %v338, 7
    %v340 = vsub.s32 0, %v339
    %v341 = vrot.slane %v337, %v340
    %342 = vmatprep.subr.mxu0 0.0
    %343 = vmatpush1.msra.mxu0 %v321
    %344 = vmatprep.subr.mxu0 0.0
    %345 = vmatpush1.msra.mxu0 %v322
    %346 = vmatprep.subr.mxu0 0.0
    %347 = vmatpush1.msra.mxu0 %v323
    %348 = vmatprep.subr.mxu0 0.0
    %349 = vmatpush1.msra.mxu0 %v324
    %350 = vmatprep.subr.mxu0 0.0
    %351 = vmatpush1.msra.mxu0 %v325
    %352 = vmatprep.subr.mxu0 0.0
    %353 = vmatpush1.msra.mxu0 %v326
    %354 = vmatprep.subr.mxu0 0.0
    %355 = vmatpush1.msra.mxu0 %v327
    %356 = vmatprep.subr.mxu0 0.0
    %357 = vmatpush1.msra.mxu0 %v328
    %358 = vmatprep.subr.mxu0 0.0
    %359 = vmatpush1.msra.mxu0 %v329
    %360 = vmatprep.subr.mxu0 0.0
    %361 = vmatpush1.msra.mxu0 %v330
    %362 = vmatprep.subr.mxu0 0.0
    %363 = vmatpush1.msra.mxu0 %v331
    %364 = vmatprep.subr.mxu0 0.0
    %365 = vmatpush1.msra.mxu0 %v332
    %366 = vmatprep.subr.mxu0 0.0
    %367 = vmatpush1.msra.mxu0 %v333
    %368 = vmatprep.subr.mxu0 0.0
    %369 = vmatpush1.msra.mxu0 %v334
    %370 = vmatprep.subr.mxu0 0.0
    %371 = vmatpush1.msra.mxu0 %v335
    %372 = vmatprep.subr.mxu0 0.0
    %373 = vmatpush1.msra.mxu0 %v336
    %374 = vmatprep.subr.mxu0 0.0
    %375 = vmatpush1.msra.mxu0 0.0
    %376 = vmatprep.subr.mxu0 0.0
    %377 = vmatpush1.msra.mxu0 0.0
    %378 = vmatprep.subr.mxu0 0.0
    %379 = vmatpush1.msra.mxu0 0.0
    %380 = vmatprep.subr.mxu0 0.0
    %381 = vmatpush1.msra.mxu0 0.0
    %382 = vmatprep.subr.mxu0 0.0
    %383 = vmatpush1.msra.mxu0 0.0
    %384 = vmatprep.subr.mxu0 0.0
    %385 = vmatpush1.msra.mxu0 0.0
    %386 = vmatprep.subr.mxu0 0.0
    %387 = vmatpush1.msra.mxu0 0.0
    %388 = vmatprep.subr.mxu0 0.0
    %389 = vmatpush1.msra.mxu0 0.0
    %390 = vmatprep.subr.mxu0 0.0
    %391 = vmatpush1.msra.mxu0 0.0
    %392 = vmatprep.subr.mxu0 0.0
    %393 = vmatpush1.msra.mxu0 0.0
    %394 = vmatprep.subr.mxu0 0.0
    %395 = vmatpush1.msra.mxu0 0.0
    %396 = vmatprep.subr.mxu0 0.0
    %397 = vmatpush1.msra.mxu0 0.0
    %398 = vmatprep.subr.mxu0 0.0
    %399 = vmatpush1.msra.mxu0 0.0
    %400 = vmatprep.subr.mxu0 0.0
    %401 = vmatpush1.msra.mxu0 0.0
    %402 = vmatprep.subr.mxu0 0.0
    %403 = vmatpush1.msra.mxu0 0.0
    %404 = vmatprep.subr.mxu0 0.0
    %405 = vmatpush1.msra.mxu0 0.0
    %406 = vmatprep.mubr.f32.mxu0 0.0
    %407 = vmatmul.mubr.f32.gmra.mrb[0].mxu0 %v25
    %v408 = vpop.f32.mrb[0].mxu0
    %v409 = vadd.f32 %v341, %v408
    %v410 = vpop.f32.mrb[0].mxu0
    %411 = vmatprep.mubr.f32.mxu0 0.0
    %412 = vmatmul.mubr.f32.gmra.mrb[0].mxu0 %v26
    %v413 = vpop.f32.mrb[0].mxu0
    %v414 = vadd.f32 %v341, %v413
    %v415 = vpop.f32.mrb[0].mxu0
    %416 = vdwg.mxu0
    %v417 = vmax.f32 %v409, 0.0
    %v418 = vmax.f32 %v414, 0.0
    %v419 = vld [vmem:[#allocation2 + $0x200] sm:$0xff]
    %v420 = vld [vmem:[#allocation2 + $0x208] sm:$0xff]
    %v421 = vld [vmem:[#allocation2 + $0x210] sm:$0xff]
    %v422 = vld [vmem:[#allocation2 + $0x218] sm:$0xff]
    %v423 = vld [vmem:[#allocation2 + $0x220] sm:$0xff]
    %v424 = vld [vmem:[#allocation2 + $0x228] sm:$0xff]
    %v425 = vld [vmem:[#allocation2 + $0x230] sm:$0xff]
    %v426 = vld [vmem:[#allocation2 + $0x238] sm:$0xff]
    %v427 = vld [vmem:[#allocation2 + $0x240] sm:$0xff]
    %v428 = vld [vmem:[#allocation2 + $0x248] sm:$0xff]
    %v429 = vld [vmem:[#allocation2 + $0x250] sm:$0xff]
    %v430 = vld [vmem:[#allocation2 + $0x258] sm:$0xff]
    %v431 = vld [vmem:[#allocation2 + $0x260] sm:$0xff]
    %v432 = vld [vmem:[#allocation2 + $0x268] sm:$0xff]
    %v433 = vld [vmem:[#allocation2 + $0x270] sm:$0xff]
    %v434 = vld [vmem:[#allocation2 + $0x278] sm:$0xff]
    %v435 = vld [vmem:[#allocation2 + $0x9a0] sm:$0x1]
    %v436 = vlaneseq
    %v437 = vshrl.u32 %v436, 7
    %v438 = vsub.s32 0, %v437
    %v439 = vrot.slane %v435, %v438
    %440 = vmatprep.subr.mxu0 0.0
    %441 = vmatpush1.msra.mxu0 %v419
    %442 = vmatprep.subr.mxu0 0.0
    %443 = vmatpush1.msra.mxu0 %v420
    %444 = vmatprep.subr.mxu0 0.0
    %445 = vmatpush1.msra.mxu0 %v421
    %446 = vmatprep.subr.mxu0 0.0
    %447 = vmatpush1.msra.mxu0 %v422
    %448 = vmatprep.subr.mxu0 0.0
    %449 = vmatpush1.msra.mxu0 %v423
    %450 = vmatprep.subr.mxu0 0.0
    %451 = vmatpush1.msra.mxu0 %v424
    %452 = vmatprep.subr.mxu0 0.0
    %453 = vmatpush1.msra.mxu0 %v425
    %454 = vmatprep.subr.mxu0 0.0
    %455 = vmatpush1.msra.mxu0 %v426
    %456 = vmatprep.subr.mxu0 0.0
    %457 = vmatpush1.msra.mxu0 %v427
    %458 = vmatprep.subr.mxu0 0.0
    %459 = vmatpush1.msra.mxu0 %v428
    %460 = vmatprep.subr.mxu0 0.0
    %461 = vmatpush1.msra.mxu0 %v429
    %462 = vmatprep.subr.mxu0 0.0
    %463 = vmatpush1.msra.mxu0 %v430
    %464 = vmatprep.subr.mxu0 0.0
    %465 = vmatpush1.msra.mxu0 %v431
    %466 = vmatprep.subr.mxu0 0.0
    %467 = vmatpush1.msra.mxu0 %v432
    %468 = vmatprep.subr.mxu0 0.0
    %469 = vmatpush1.msra.mxu0 %v433
    %470 = vmatprep.subr.mxu0 0.0
    %471 = vmatpush1.msra.mxu0 %v434
    %472 = vmatprep.subr.mxu0 0.0
    %473 = vmatpush1.msra.mxu0 0.0
    %474 = vmatprep.subr.mxu0 0.0
    %475 = vmatpush1.msra.mxu0 0.0
    %476 = vmatprep.subr.mxu0 0.0
    %477 = vmatpush1.msra.mxu0 0.0
    %478 = vmatprep.subr.mxu0 0.0
    %479 = vmatpush1.msra.mxu0 0.0
    %480 = vmatprep.subr.mxu0 0.0
    %481 = vmatpush1.msra.mxu0 0.0
    %482 = vmatprep.subr.mxu0 0.0
    %483 = vmatpush1.msra.mxu0 0.0
    %484 = vmatprep.subr.mxu0 0.0
    %485 = vmatpush1.msra.mxu0 0.0
    %486 = vmatprep.subr.mxu0 0.0
    %487 = vmatpush1.msra.mxu0 0.0
    %488 = vmatprep.subr.mxu0 0.0
    %489 = vmatpush1.msra.mxu0 0.0
    %490 = vmatprep.subr.mxu0 0.0
    %491 = vmatpush1.msra.mxu0 0.0
    %492 = vmatprep.subr.mxu0 0.0
    %493 = vmatpush1.msra.mxu0 0.0
    %494 = vmatprep.subr.mxu0 0.0
    %495 = vmatpush1.msra.mxu0 0.0
    %496 = vmatprep.subr.mxu0 0.0
    %497 = vmatpush1.msra.mxu0 0.0
    %498 = vmatprep.subr.mxu0 0.0
    %499 = vmatpush1.msra.mxu0 0.0
    %500 = vmatprep.subr.mxu0 0.0
    %501 = vmatpush1.msra.mxu0 0.0
    %502 = vmatprep.subr.mxu0 0.0
    %503 = vmatpush1.msra.mxu0 0.0
    %504 = vmatprep.mubr.f32.mxu0 0.0
    %505 = vmatmul.mubr.f32.gmra.mrb[0].mxu0 %v417
    %v506 = vpop.f32.mrb[0].mxu0
    %v507 = vadd.f32 %v439, %v506
    %v508 = vpop.f32.mrb[0].mxu0
    %509 = vmatprep.mubr.f32.mxu0 0.0
    %510 = vmatmul.mubr.f32.gmra.mrb[0].mxu0 %v418
    %v511 = vpop.f32.mrb[0].mxu0
    %v512 = vadd.f32 %v439, %v511
    %v513 = vpop.f32.mrb[0].mxu0
    %514 = vdwg.mxu0
    %v515 = vmax.f32 %v507, 0.0
    %v516 = vmax.f32 %v512, 0.0
    %v517 = vld [vmem:[#allocation2 + $0x280] sm:$0xff]
    %v518 = vld [vmem:[#allocation2 + $0x288] sm:$0xff]
    %v519 = vld [vmem:[#allocation2 + $0x290] sm:$0xff]
    %v520 = vld [vmem:[#allocation2 + $0x298] sm:$0xff]
    %v521 = vld [vmem:[#allocation2 + $0x2a0] sm:$0xff]
    %v522 = vld [vmem:[#allocation2 + $0x2a8] sm:$0xff]
    %v523 = vld [vmem:[#allocation2 + $0x2b0] sm:$0xff]
    %v524 = vld [vmem:[#allocation2 + $0x2b8] sm:$0xff]
    %v525 = vld [vmem:[#allocation2 + $0x2c0] sm:$0xff]
    %v526 = vld [vmem:[#allocation2 + $0x2c8] sm:$0xff]
    %v527 = vld [vmem:[#allocation2 + $0x2d0] sm:$0xff]
    %v528 = vld [vmem:[#allocation2 + $0x2d8] sm:$0xff]
    %v529 = vld [vmem:[#allocation2 + $0x2e0] sm:$0xff]
    %v530 = vld [vmem:[#allocation2 + $0x2e8] sm:$0xff]
    %v531 = vld [vmem:[#allocation2 + $0x2f0] sm:$0xff]
    %v532 = vld [vmem:[#allocation2 + $0x2f8] sm:$0xff]
    %v533 = vld [vmem:[#allocation2 + $0x9a8] sm:$0x1]
    %v534 = vlaneseq
    %v535 = vshrl.u32 %v534, 7
    %v536 = vsub.s32 0, %v535
    %v537 = vrot.slane %v533, %v536
    %538 = vmatprep.subr.mxu0 0.0
    %539 = vmatpush1.msra.mxu0 %v517
    %540 = vmatprep.subr.mxu0 0.0
    %541 = vmatpush1.msra.mxu0 %v518
    %542 = vmatprep.subr.mxu0 0.0
    %543 = vmatpush1.msra.mxu0 %v519
    %544 = vmatprep.subr.mxu0 0.0
    %545 = vmatpush1.msra.mxu0 %v520
    %546 = vmatprep.subr.mxu0 0.0
    %547 = vmatpush1.msra.mxu0 %v521
    %548 = vmatprep.subr.mxu0 0.0
    %549 = vmatpush1.msra.mxu0 %v522
    %550 = vmatprep.subr.mxu0 0.0
    %551 = vmatpush1.msra.mxu0 %v523
    %552 = vmatprep.subr.mxu0 0.0
    %553 = vmatpush1.msra.mxu0 %v524
    %554 = vmatprep.subr.mxu0 0.0
    %555 = vmatpush1.msra.mxu0 %v525
    %556 = vmatprep.subr.mxu0 0.0
    %557 = vmatpush1.msra.mxu0 %v526
    %558 = vmatprep.subr.mxu0 0.0
    %559 = vmatpush1.msra.mxu0 %v527
    %560 = vmatprep.subr.mxu0 0.0
    %561 = vmatpush1.msra.mxu0 %v528
    %562 = vmatprep.subr.mxu0 0.0
    %563 = vmatpush1.msra.mxu0 %v529
    %564 = vmatprep.subr.mxu0 0.0
    %565 = vmatpush1.msra.mxu0 %v530
    %566 = vmatprep.subr.mxu0 0.0
    %567 = vmatpush1.msra.mxu0 %v531
    %568 = vmatprep.subr.mxu0 0.0
    %569 = vmatpush1.msra.mxu0 %v532
    %570 = vmatprep.subr.mxu0 0.0
    %571 = vmatpush1.msra.mxu0 0.0
    %572 = vmatprep.subr.mxu0 0.0
    %573 = vmatpush1.msra.mxu0 0.0
    %574 = vmatprep.subr.mxu0 0.0
    %575 = vmatpush1.msra.mxu0 0.0
    %576 = vmatprep.subr.mxu0 0.0
    %577 = vmatpush1.msra.mxu0 0.0
    %578 = vmatprep.subr.mxu0 0.0
    %579 = vmatpush1.msra.mxu0 0.0
    %580 = vmatprep.subr.mxu0 0.0
    %581 = vmatpush1.msra.mxu0 0.0
    %582 = vmatprep.subr.mxu0 0.0
    %583 = vmatpush1.msra.mxu0 0.0
    %584 = vmatprep.subr.mxu0 0.0
    %585 = vmatpush1.msra.mxu0 0.0
    %586 = vmatprep.subr.mxu0 0.0
    %587 = vmatpush1.msra.mxu0 0.0
    %588 = vmatprep.subr.mxu0 0.0
    %589 = vmatpush1.msra.mxu0 0.0
    %590 = vmatprep.subr.mxu0 0.0
    %591 = vmatpush1.msra.mxu0 0.0
    %592 = vmatprep.subr.mxu0 0.0
    %593 = vmatpush1.msra.mxu0 0.0
    %594 = vmatprep.subr.mxu0 0.0
    %595 = vmatpush1.msra.mxu0 0.0
    %596 = vmatprep.subr.mxu0 0.0
    %597 = vmatpush1.msra.mxu0 0.0
    %598 = vmatprep.subr.mxu0 0.0
    %599 = vmatpush1.msra.mxu0 0.0
    %600 = vmatprep.subr.mxu0 0.0
    %601 = vmatpush1.msra.mxu0 0.0
    %602 = vmatprep.mubr.f32.mxu0 0.0
    %603 = vmatmul.mubr.f32.gmra.mrb[0].mxu0 %v515
    %v604 = vpop.f32.mrb[0].mxu0
    %v605 = vadd.f32 %v537, %v604
    %v606 = vpop.f32.mrb[0].mxu0
    %607 = vmatprep.mubr.f32.mxu0 0.0
    %608 = vmatmul.mubr.f32.gmra.mrb[0].mxu0 %v516
    %v609 = vpop.f32.mrb[0].mxu0
    %v610 = vadd.f32 %v537, %v609
    %v611 = vpop.f32.mrb[0].mxu0
    %612 = vdwg.mxu0
    %v613 = vmax.f32 %v605, 0.0
    %v614 = vmax.f32 %v610, 0.0
    %v615 = vld [vmem:[#allocation2 + $0x300] sm:$0xff]
    %v616 = vld [vmem:[#allocation2 + $0x308] sm:$0xff]
    %v617 = vld [vmem:[#allocation2 + $0x310] sm:$0xff]
    %v618 = vld [vmem:[#allocation2 + $0x318] sm:$0xff]
    %v619 = vld [vmem:[#allocation2 + $0x320] sm:$0xff]
    %v620 = vld [vmem:[#allocation2 + $0x328] sm:$0xff]
    %v621 = vld [vmem:[#allocation2 + $0x330] sm:$0xff]
    %v622 = vld [vmem:[#allocation2 + $0x338] sm:$0xff]
    %v623 = vld [vmem:[#allocation2 + $0x340] sm:$0xff]
    %v624 = vld [vmem:[#allocation2 + $0x348] sm:$0xff]
    %v625 = vld [vmem:[#allocation2 + $0x350] sm:$0xff]
    %v626 = vld [vmem:[#allocation2 + $0x358] sm:$0xff]
    %v627 = vld [vmem:[#allocation2 + $0x360] sm:$0xff]
    %v628 = vld [vmem:[#allocation2 + $0x368] sm:$0xff]
    %v629 = vld [vmem:[#allocation2 + $0x370] sm:$0xff]
    %v630 = vld [vmem:[#allocation2 + $0x378] sm:$0xff]
    %v631 = vld [vmem:[#allocation2 + $0x9b0] sm:$0x1]
    %v632 = vlaneseq
    %v633 = vshrl.u32 %v632, 7
    %v634 = vsub.s32 0, %v633
    %v635 = vrot.slane %v631, %v634
    %636 = vmatprep.subr.mxu0 0.0
    %637 = vmatpush1.msra.mxu0 %v615
    %638 = vmatprep.subr.mxu0 0.0
    %639 = vmatpush1.msra.mxu0 %v616
    %640 = vmatprep.subr.mxu0 0.0
    %641 = vmatpush1.msra.mxu0 %v617
    %642 = vmatprep.subr.mxu0 0.0
    %643 = vmatpush1.msra.mxu0 %v618
    %644 = vmatprep.subr.mxu0 0.0
    %645 = vmatpush1.msra.mxu0 %v619
    %646 = vmatprep.subr.mxu0 0.0
    %647 = vmatpush1.msra.mxu0 %v620
    %648 = vmatprep.subr.mxu0 0.0
    %649 = vmatpush1.msra.mxu0 %v621
    %650 = vmatprep.subr.mxu0 0.0
    %651 = vmatpush1.msra.mxu0 %v622
    %652 = vmatprep.subr.mxu0 0.0
    %653 = vmatpush1.msra.mxu0 %v623
    %654 = vmatprep.subr.mxu0 0.0
    %655 = vmatpush1.msra.mxu0 %v624
    %656 = vmatprep.subr.mxu0 0.0
    %657 = vmatpush1.msra.mxu0 %v625
    %658 = vmatprep.subr.mxu0 0.0
    %659 = vmatpush1.msra.mxu0 %v626
    %660 = vmatprep.subr.mxu0 0.0
    %661 = vmatpush1.msra.mxu0 %v627
    %662 = vmatprep.subr.mxu0 0.0
    %663 = vmatpush1.msra.mxu0 %v628
    %664 = vmatprep.subr.mxu0 0.0
    %665 = vmatpush1.msra.mxu0 %v629
    %666 = vmatprep.subr.mxu0 0.0
    %667 = vmatpush1.msra.mxu0 %v630
    %668 = vmatprep.subr.mxu0 0.0
    %669 = vmatpush1.msra.mxu0 0.0
    %670 = vmatprep.subr.mxu0 0.0
    %671 = vmatpush1.msra.mxu0 0.0
    %672 = vmatprep.subr.mxu0 0.0
    %673 = vmatpush1.msra.mxu0 0.0
    %674 = vmatprep.subr.mxu0 0.0
    %675 = vmatpush1.msra.mxu0 0.0
    %676 = vmatprep.subr.mxu0 0.0
    %677 = vmatpush1.msra.mxu0 0.0
    %678 = vmatprep.subr.mxu0 0.0
    %679 = vmatpush1.msra.mxu0 0.0
    %680 = vmatprep.subr.mxu0 0.0
    %681 = vmatpush1.msra.mxu0 0.0
    %682 = vmatprep.subr.mxu0 0.0
    %683 = vmatpush1.msra.mxu0 0.0
    %684 = vmatprep.subr.mxu0 0.0
    %685 = vmatpush1.msra.mxu0 0.0
    %686 = vmatprep.subr.mxu0 0.0
    %687 = vmatpush1.msra.mxu0 0.0
    %688 = vmatprep.subr.mxu0 0.0
    %689 = vmatpush1.msra.mxu0 0.0
    %690 = vmatprep.subr.mxu0 0.0
    %691 = vmatpush1.msra.mxu0 0.0
    %692 = vmatprep.subr.mxu0 0.0
    %693 = vmatpush1.msra.mxu0 0.0
    %694 = vmatprep.subr.mxu0 0.0
    %695 = vmatpush1.msra.mxu0 0.0
    %696 = vmatprep.subr.mxu0 0.0
    %697 = vmatpush1.msra.mxu0 0.0
    %698 = vmatprep.subr.mxu0 0.0
    %699 = vmatpush1.msra.mxu0 0.0
    %700 = vmatprep.mubr.f32.mxu0 0.0
    %701 = vmatmul.mubr.f32.gmra.mrb[0].mxu0 %v25
    %v702 = vpop.f32.mrb[0].mxu0
    %v703 = vadd.f32 %v635, %v702
    %v704 = vpop.f32.mrb[0].mxu0
    %705 = vmatprep.mubr.f32.mxu0 0.0
    %706 = vmatmul.mubr.f32.gmra.mrb[0].mxu0 %v26
    %v707 = vpop.f32.mrb[0].mxu0
    %v708 = vadd.f32 %v635, %v707
    %v709 = vpop.f32.mrb[0].mxu0
    %710 = vdwg.mxu0
    %v711 = vmax.f32 %v703, 0.0
    %v712 = vmax.f32 %v708, 0.0
    %v713 = vld [vmem:[#allocation2 + $0x380] sm:$0xff]
    %v714 = vld [vmem:[#allocation2 + $0x388] sm:$0xff]
    %v715 = vld [vmem:[#allocation2 + $0x390] sm:$0xff]
    %v716 = vld [vmem:[#allocation2 + $0x398] sm:$0xff]
    %v717 = vld [vmem:[#allocation2 + $0x3a0] sm:$0xff]
    %v718 = vld [vmem:[#allocation2 + $0x3a8] sm:$0xff]
    %v719 = vld [vmem:[#allocation2 + $0x3b0] sm:$0xff]
    %v720 = vld [vmem:[#allocation2 + $0x3b8] sm:$0xff]
    %v721 = vld [vmem:[#allocation2 + $0x3c0] sm:$0xff]
    %v722 = vld [vmem:[#allocation2 + $0x3c8] sm:$0xff]
    %v723 = vld [vmem:[#allocation2 + $0x3d0] sm:$0xff]
    %v724 = vld [vmem:[#allocation2 + $0x3d8] sm:$0xff]
    %v725 = vld [vmem:[#allocation2 + $0x3e0] sm:$0xff]
    %v726 = vld [vmem:[#allocation2 + $0x3e8] sm:$0xff]
    %v727 = vld [vmem:[#allocation2 + $0x3f0] sm:$0xff]
    %v728 = vld [vmem:[#allocation2 + $0x3f8] sm:$0xff]
    %v729 = vld [vmem:[#allocation2 + $0x9b8] sm:$0x1]
    %v730 = vlaneseq
    %v731 = vshrl.u32 %v730, 7
    %v732 = vsub.s32 0, %v731
    %v733 = vrot.slane %v729, %v732
    %734 = vmatprep.subr.mxu0 0.0
    %735 = vmatpush1.msra.mxu0 %v713
    %736 = vmatprep.subr.mxu0 0.0
    %737 = vmatpush1.msra.mxu0 %v714
    %738 = vmatprep.subr.mxu0 0.0
    %739 = vmatpush1.msra.mxu0 %v715
    %740 = vmatprep.subr.mxu0 0.0
    %741 = vmatpush1.msra.mxu0 %v716
    %742 = vmatprep.subr.mxu0 0.0
    %743 = vmatpush1.msra.mxu0 %v717
    %744 = vmatprep.subr.mxu0 0.0
    %745 = vmatpush1.msra.mxu0 %v718
    %746 = vmatprep.subr.mxu0 0.0
    %747 = vmatpush1.msra.mxu0 %v719
    %748 = vmatprep.subr.mxu0 0.0
    %749 = vmatpush1.msra.mxu0 %v720
    %750 = vmatprep.subr.mxu0 0.0
    %751 = vmatpush1.msra.mxu0 %v721
    %752 = vmatprep.subr.mxu0 0.0
    %753 = vmatpush1.msra.mxu0 %v722
    %754 = vmatprep.subr.mxu0 0.0
    %755 = vmatpush1.msra.mxu0 %v723
    %756 = vmatprep.subr.mxu0 0.0
    %757 = vmatpush1.msra.mxu0 %v724
    %758 = vmatprep.subr.mxu0 0.0
    %759 = vmatpush1.msra.mxu0 %v725
    %760 = vmatprep.subr.mxu0 0.0
    %761 = vmatpush1.msra.mxu0 %v726
    %762 = vmatprep.subr.mxu0 0.0
    %763 = vmatpush1.msra.mxu0 %v727
    %764 = vmatprep.subr.mxu0 0.0
    %765 = vmatpush1.msra.mxu0 %v728
    %766 = vmatprep.subr.mxu0 0.0
    %767 = vmatpush1.msra.mxu0 0.0
    %768 = vmatprep.subr.mxu0 0.0
    %769 = vmatpush1.msra.mxu0 0.0
    %770 = vmatprep.subr.mxu0 0.0
    %771 = vmatpush1.msra.mxu0 0.0
    %772 = vmatprep.subr.mxu0 0.0
    %773 = vmatpush1.msra.mxu0 0.0
    %774 = vmatprep.subr.mxu0 0.0
    %775 = vmatpush1.msra.mxu0 0.0
    %776 = vmatprep.subr.mxu0 0.0
    %777 = vmatpush1.msra.mxu0 0.0
    %778 = vmatprep.subr.mxu0 0.0
    %779 = vmatpush1.msra.mxu0 0.0
    %780 = vmatprep.subr.mxu0 0.0
    %781 = vmatpush1.msra.mxu0 0.0
    %782 = vmatprep.subr.mxu0 0.0
    %783 = vmatpush1.msra.mxu0 0.0
    %784 = vmatprep.subr.mxu0 0.0
    %785 = vmatpush1.msra.mxu0 0.0
    %786 = vmatprep.subr.mxu0 0.0
    %787 = vmatpush1.msra.mxu0 0.0
    %788 = vmatprep.subr.mxu0 0.0
    %789 = vmatpush1.msra.mxu0 0.0
    %790 = vmatprep.subr.mxu0 0.0
    %791 = vmatpush1.msra.mxu0 0.0
    %792 = vmatprep.subr.mxu0 0.0
    %793 = vmatpush1.msra.mxu0 0.0
    %794 = vmatprep.subr.mxu0 0.0
    %795 = vmatpush1.msra.mxu0 0.0
    %796 = vmatprep.subr.mxu0 0.0
    %797 = vmatpush1.msra.mxu0 0.0
    %798 = vmatprep.mubr.f32.mxu0 0.0
    %799 = vmatmul.mubr.f32.gmra.mrb[0].mxu0 %v319
    %v800 = vpop.f32.mrb[0].mxu0
    %v801 = vadd.f32 %v733, %v800
    %v802 = vpop.f32.mrb[0].mxu0
    %803 = vmatprep.mubr.f32.mxu0 0.0
    %804 = vmatmul.mubr.f32.gmra.mrb[0].mxu0 %v320
    %v805 = vpop.f32.mrb[0].mxu0
    %v806 = vadd.f32 %v733, %v805
    %v807 = vpop.f32.mrb[0].mxu0
    %808 = vmatprep.mubr.f32.mxu0 0.0
    %809 = vmatmul.mubr.f32.gmra.mrb[0].mxu0 %v613
    %v810 = vpop.f32.mrb[0].mxu0
    %v811 = vadd.f32 %v733, %v810
    %v812 = vpop.f32.mrb[0].mxu0
    %813 = vmatprep.mubr.f32.mxu0 0.0
    %814 = vmatmul.mubr.f32.gmra.mrb[0].mxu0 %v614
    %v815 = vpop.f32.mrb[0].mxu0
    %v816 = vadd.f32 %v733, %v815
    %v817 = vpop.f32.mrb[0].mxu0
    %818 = vmatprep.mubr.f32.mxu0 0.0
    %819 = vmatmul.mubr.f32.gmra.mrb[0].mxu0 %v711
    %v820 = vpop.f32.mrb[0].mxu0
    %v821 = vadd.f32 %v733, %v820
    %v822 = vpop.f32.mrb[0].mxu0
    %823 = vmatprep.mubr.f32.mxu0 0.0
    %824 = vmatmul.mubr.f32.gmra.mrb[0].mxu0 %v712
    %v825 = vpop.f32.mrb[0].mxu0
    %v826 = vadd.f32 %v733, %v825
    %v827 = vpop.f32.mrb[0].mxu0
    %828 = vdwg.mxu0
    %v829 = vld [vmem:[#allocation2 + $0x400] sm:$0xff]
    %v830 = vld [vmem:[#allocation2 + $0x408] sm:$0xff]
    %v831 = vld [vmem:[#allocation2 + $0x410] sm:$0xff]
    %v832 = vld [vmem:[#allocation2 + $0x418] sm:$0xff]
    %v833 = vld [vmem:[#allocation2 + $0x420] sm:$0xff]
    %v834 = vld [vmem:[#allocation2 + $0x428] sm:$0xff]
    %v835 = vld [vmem:[#allocation2 + $0x430] sm:$0xff]
    %v836 = vld [vmem:[#allocation2 + $0x438] sm:$0xff]
    %v837 = vld [vmem:[#allocation2 + $0x440] sm:$0xff]
    %v838 = vld [vmem:[#allocation2 + $0x448] sm:$0xff]
    %v839 = vld [vmem:[#allocation2 + $0x450] sm:$0xff]
    %v840 = vld [vmem:[#allocation2 + $0x458] sm:$0xff]
    %v841 = vld [vmem:[#allocation2 + $0x460] sm:$0xff]
    %v842 = vld [vmem:[#allocation2 + $0x468] sm:$0xff]
    %v843 = vld [vmem:[#allocation2 + $0x470] sm:$0xff]
    %v844 = vld [vmem:[#allocation2 + $0x478] sm:$0xff]
    %v845 = vld [vmem:[#allocation2 + $0x9c0] sm:$0x1]
    %v846 = vlaneseq
    %v847 = vshrl.u32 %v846, 7
    %v848 = vsub.s32 0, %v847
    %v849 = vrot.slane %v845, %v848
    %850 = vmatprep.subr.mxu0 0.0
    %851 = vmatpush1.msra.mxu0 %v829
    %852 = vmatprep.subr.mxu0 0.0
    %853 = vmatpush1.msra.mxu0 %v830
    %854 = vmatprep.subr.mxu0 0.0
    %855 = vmatpush1.msra.mxu0 %v831
    %856 = vmatprep.subr.mxu0 0.0
    %857 = vmatpush1.msra.mxu0 %v832
    %858 = vmatprep.subr.mxu0 0.0
    %859 = vmatpush1.msra.mxu0 %v833
    %860 = vmatprep.subr.mxu0 0.0
    %861 = vmatpush1.msra.mxu0 %v834
    %862 = vmatprep.subr.mxu0 0.0
    %863 = vmatpush1.msra.mxu0 %v835
    %864 = vmatprep.subr.mxu0 0.0
    %865 = vmatpush1.msra.mxu0 %v836
    %866 = vmatprep.subr.mxu0 0.0
    %867 = vmatpush1.msra.mxu0 %v837
    %868 = vmatprep.subr.mxu0 0.0
    %869 = vmatpush1.msra.mxu0 %v838
    %870 = vmatprep.subr.mxu0 0.0
    %871 = vmatpush1.msra.mxu0 %v839
    %872 = vmatprep.subr.mxu0 0.0
    %873 = vmatpush1.msra.mxu0 %v840
    %874 = vmatprep.subr.mxu0 0.0
    %875 = vmatpush1.msra.mxu0 %v841
    %876 = vmatprep.subr.mxu0 0.0
    %877 = vmatpush1.msra.mxu0 %v842
    %878 = vmatprep.subr.mxu0 0.0
    %879 = vmatpush1.msra.mxu0 %v843
    %880 = vmatprep.subr.mxu0 0.0
    %881 = vmatpush1.msra.mxu0 %v844
    %882 = vmatprep.subr.mxu0 0.0
    %883 = vmatpush1.msra.mxu0 0.0
    %884 = vmatprep.subr.mxu0 0.0
    %885 = vmatpush1.msra.mxu0 0.0
    %886 = vmatprep.subr.mxu0 0.0
    %887 = vmatpush1.msra.mxu0 0.0
    %888 = vmatprep.subr.mxu0 0.0
    %889 = vmatpush1.msra.mxu0 0.0
    %890 = vmatprep.subr.mxu0 0.0
    %891 = vmatpush1.msra.mxu0 0.0
    %892 = vmatprep.subr.mxu0 0.0
    %893 = vmatpush1.msra.mxu0 0.0
    %894 = vmatprep.subr.mxu0 0.0
    %895 = vmatpush1.msra.mxu0 0.0
    %896 = vmatprep.subr.mxu0 0.0
    %897 = vmatpush1.msra.mxu0 0.0
    %898 = vmatprep.subr.mxu0 0.0
    %899 = vmatpush1.msra.mxu0 0.0
    %900 = vmatprep.subr.mxu0 0.0
    %901 = vmatpush1.msra.mxu0 0.0
    %902 = vmatprep.subr.mxu0 0.0
    %903 = vmatpush1.msra.mxu0 0.0
    %904 = vmatprep.subr.mxu0 0.0
    %905 = vmatpush1.msra.mxu0 0.0
    %906 = vmatprep.subr.mxu0 0.0
    %907 = vmatpush1.msra.mxu0 0.0
    %908 = vmatprep.subr.mxu0 0.0
    %909 = vmatpush1.msra.mxu0 0.0
    %910 = vmatprep.subr.mxu0 0.0
    %911 = vmatpush1.msra.mxu0 0.0
    %912 = vmatprep.subr.mxu0 0.0
    %913 = vmatpush1.msra.mxu0 0.0
    %914 = vmatprep.mubr.f32.mxu0 0.0
    %915 = vmatmul.mubr.f32.gmra.mrb[0].mxu0 %v319
    %v916 = vpop.f32.mrb[0].mxu0
    %v917 = vadd.f32 %v849, %v916
    %v918 = vpop.f32.mrb[0].mxu0
    %919 = vmatprep.mubr.f32.mxu0 0.0
    %920 = vmatmul.mubr.f32.gmra.mrb[0].mxu0 %v320
    %v921 = vpop.f32.mrb[0].mxu0
    %v922 = vadd.f32 %v849, %v921
    %v923 = vpop.f32.mrb[0].mxu0
    %924 = vmatprep.mubr.f32.mxu0 0.0
    %925 = vmatmul.mubr.f32.gmra.mrb[0].mxu0 %v613
    %v926 = vpop.f32.mrb[0].mxu0
    %v927 = vadd.f32 %v849, %v926
    %v928 = vpop.f32.mrb[0].mxu0
    %929 = vmatprep.mubr.f32.mxu0 0.0
    %930 = vmatmul.mubr.f32.gmra.mrb[0].mxu0 %v614
    %v931 = vpop.f32.mrb[0].mxu0
    %v932 = vadd.f32 %v849, %v931
    %v933 = vpop.f32.mrb[0].mxu0
    %934 = vmatprep.mubr.f32.mxu0 0.0
    %935 = vmatmul.mubr.f32.gmra.mrb[0].mxu0 %v711
    %v936 = vpop.f32.mrb[0].mxu0
    %v937 = vadd.f32 %v849, %v936
    %v938 = vpop.f32.mrb[0].mxu0
    %939 = vmatprep.mubr.f32.mxu0 0.0
    %940 = vmatmul.mubr.f32.gmra.mrb[0].mxu0 %v712
    %v941 = vpop.f32.mrb[0].mxu0
    %v942 = vadd.f32 %v849, %v941
    %v943 = vpop.f32.mrb[0].mxu0
    %944 = vdwg.mxu0
    %v945 = vld [vmem:[#allocation2 + $0x480] sm:$0xff]
    %v946 = vld [vmem:[#allocation2 + $0x488] sm:$0xff]
    %v947 = vld [vmem:[#allocation2 + $0x490] sm:$0xff]
    %v948 = vld [vmem:[#allocation2 + $0x498] sm:$0xff]
    %v949 = vld [vmem:[#allocation2 + $0x4a0] sm:$0xff]
    %v950 = vld [vmem:[#allocation2 + $0x4a8] sm:$0xff]
    %v951 = vld [vmem:[#allocation2 + $0x4b0] sm:$0xff]
    %v952 = vld [vmem:[#allocation2 + $0x4b8] sm:$0xff]
    %v953 = vld [vmem:[#allocation2 + $0x4c0] sm:$0xff]
    %v954 = vld [vmem:[#allocation2 + $0x4c8] sm:$0xff]
    %v955 = vld [vmem:[#allocation2 + $0x4d0] sm:$0xff]
    %v956 = vld [vmem:[#allocation2 + $0x4d8] sm:$0xff]
    %v957 = vld [vmem:[#allocation2 + $0x4e0] sm:$0xff]
    %v958 = vld [vmem:[#allocation2 + $0x4e8] sm:$0xff]
    %v959 = vld [vmem:[#allocation2 + $0x4f0] sm:$0xff]
    %v960 = vld [vmem:[#allocation2 + $0x4f8] sm:$0xff]
    %v961 = vld [vmem:[#allocation2 + $0x9c8] sm:$0x1]
    %v962 = vlaneseq
    %v963 = vshrl.u32 %v962, 7
    %v964 = vsub.s32 0, %v963
    %v965 = vrot.slane %v961, %v964
    %966 = vmatprep.subr.mxu0 0.0
    %967 = vmatpush1.msra.mxu0 %v945
    %968 = vmatprep.subr.mxu0 0.0
    %969 = vmatpush1.msra.mxu0 %v946
    %970 = vmatprep.subr.mxu0 0.0
    %971 = vmatpush1.msra.mxu0 %v947
    %972 = vmatprep.subr.mxu0 0.0
    %973 = vmatpush1.msra.mxu0 %v948
    %974 = vmatprep.subr.mxu0 0.0
    %975 = vmatpush1.msra.mxu0 %v949
    %976 = vmatprep.subr.mxu0 0.0
    %977 = vmatpush1.msra.mxu0 %v950
    %978 = vmatprep.subr.mxu0 0.0
    %979 = vmatpush1.msra.mxu0 %v951
    %980 = vmatprep.subr.mxu0 0.0
    %981 = vmatpush1.msra.mxu0 %v952
    %982 = vmatprep.subr.mxu0 0.0
    %983 = vmatpush1.msra.mxu0 %v953
    %984 = vmatprep.subr.mxu0 0.0
    %985 = vmatpush1.msra.mxu0 %v954
    %986 = vmatprep.subr.mxu0 0.0
    %987 = vmatpush1.msra.mxu0 %v955
    %988 = vmatprep.subr.mxu0 0.0
    %989 = vmatpush1.msra.mxu0 %v956
    %990 = vmatprep.subr.mxu0 0.0
    %991 = vmatpush1.msra.mxu0 %v957
    %992 = vmatprep.subr.mxu0 0.0
    %993 = vmatpush1.msra.mxu0 %v958
    %994 = vmatprep.subr.mxu0 0.0
    %995 = vmatpush1.msra.mxu0 %v959
    %996 = vmatprep.subr.mxu0 0.0
    %997 = vmatpush1.msra.mxu0 %v960
    %998 = vmatprep.subr.mxu0 0.0
    %999 = vmatpush1.msra.mxu0 0.0
    %1000 = vmatprep.subr.mxu0 0.0
    %1001 = vmatpush1.msra.mxu0 0.0
    %1002 = vmatprep.subr.mxu0 0.0
    %1003 = vmatpush1.msra.mxu0 0.0
    %1004 = vmatprep.subr.mxu0 0.0
    %1005 = vmatpush1.msra.mxu0 0.0
    %1006 = vmatprep.subr.mxu0 0.0
    %1007 = vmatpush1.msra.mxu0 0.0
    %1008 = vmatprep.subr.mxu0 0.0
    %1009 = vmatpush1.msra.mxu0 0.0
    %1010 = vmatprep.subr.mxu0 0.0
    %1011 = vmatpush1.msra.mxu0 0.0
    %1012 = vmatprep.subr.mxu0 0.0
    %1013 = vmatpush1.msra.mxu0 0.0
    %1014 = vmatprep.subr.mxu0 0.0
    %1015 = vmatpush1.msra.mxu0 0.0
    %1016 = vmatprep.subr.mxu0 0.0
    %1017 = vmatpush1.msra.mxu0 0.0
    %1018 = vmatprep.subr.mxu0 0.0
    %1019 = vmatpush1.msra.mxu0 0.0
    %1020 = vmatprep.subr.mxu0 0.0
    %1021 = vmatpush1.msra.mxu0 0.0
    %1022 = vmatprep.subr.mxu0 0.0
    %1023 = vmatpush1.msra.mxu0 0.0
    %1024 = vmatprep.subr.mxu0 0.0
    %1025 = vmatpush1.msra.mxu0 0.0
    %1026 = vmatprep.subr.mxu0 0.0
    %1027 = vmatpush1.msra.mxu0 0.0
    %1028 = vmatprep.subr.mxu0 0.0
    %1029 = vmatpush1.msra.mxu0 0.0
    %1030 = vmatprep.mubr.f32.mxu0 0.0
    %1031 = vmatmul.mubr.f32.gmra.mrb[0].mxu0 %v319
    %v1032 = vpop.f32.mrb[0].mxu0
    %v1033 = vadd.f32 %v965, %v1032
    %v1034 = vpop.f32.mrb[0].mxu0
    %1035 = vmatprep.mubr.f32.mxu0 0.0
    %1036 = vmatmul.mubr.f32.gmra.mrb[0].mxu0 %v320
    %v1037 = vpop.f32.mrb[0].mxu0
    %v1038 = vadd.f32 %v965, %v1037
    %v1039 = vpop.f32.mrb[0].mxu0
    %1040 = vmatprep.mubr.f32.mxu0 0.0
    %1041 = vmatmul.mubr.f32.gmra.mrb[0].mxu0 %v613
    %v1042 = vpop.f32.mrb[0].mxu0
    %v1043 = vadd.f32 %v965, %v1042
    %v1044 = vpop.f32.mrb[0].mxu0
    %1045 = vmatprep.mubr.f32.mxu0 0.0
    %1046 = vmatmul.mubr.f32.gmra.mrb[0].mxu0 %v614
    %v1047 = vpop.f32.mrb[0].mxu0
    %v1048 = vadd.f32 %v965, %v1047
    %v1049 = vpop.f32.mrb[0].mxu0
    %1050 = vmatprep.mubr.f32.mxu0 0.0
    %1051 = vmatmul.mubr.f32.gmra.mrb[0].mxu0 %v711
    %v1052 = vpop.f32.mrb[0].mxu0
    %v1053 = vadd.f32 %v965, %v1052
    %v1054 = vpop.f32.mrb[0].mxu0
    %1055 = vmatprep.mubr.f32.mxu0 0.0
    %1056 = vmatmul.mubr.f32.gmra.mrb[0].mxu0 %v712
    %v1057 = vpop.f32.mrb[0].mxu0
    %v1058 = vadd.f32 %v965, %v1057
    %v1059 = vpop.f32.mrb[0].mxu0
    %1060 = vdwg.mxu0
    %v1061 = vmul.f32 %v801, %v917
    %v1062 = vmul.f32 %v806, %v922
    %v1063 = vmul.f32 %v801, %v927
    %v1064 = vmul.f32 %v806, %v932
    %v1065 = vmul.f32 %v801, %v937
    %v1066 = vmul.f32 %v806, %v942
    %v1067 = vmul.f32 %v811, %v917
    %v1068 = vmul.f32 %v816, %v922
    %v1069 = vmul.f32 %v811, %v927
    %v1070 = vmul.f32 %v816, %v932
    %v1071 = vmul.f32 %v811, %v937
    %v1072 = vmul.f32 %v816, %v942
    %v1073 = vmul.f32 %v821, %v917
    %v1074 = vmul.f32 %v826, %v922
    %v1075 = vmul.f32 %v821, %v927
    %v1076 = vmul.f32 %v826, %v932
    %v1077 = vmul.f32 %v821, %v937
    %v1078 = vmul.f32 %v826, %v942
    %v1079 = vld [vmem:[#allocation2 + $0x580] sm:$0xff]
    %v1080 = vld [vmem:[#allocation2 + $0x588] sm:$0xff]
    %v1081 = vld [vmem:[#allocation2 + $0x590] sm:$0xff]
    %v1082 = vld [vmem:[#allocation2 + $0x598] sm:$0xff]
    %v1083 = vld [vmem:[#allocation2 + $0x5a0] sm:$0xff]
    %v1084 = vld [vmem:[#allocation2 + $0x5a8] sm:$0xff]
    %v1085 = vld [vmem:[#allocation2 + $0x5b0] sm:$0xff]
    %v1086 = vld [vmem:[#allocation2 + $0x5b8] sm:$0xff]
    %v1087 = vld [vmem:[#allocation2 + $0x5c0] sm:$0xff]
    %v1088 = vld [vmem:[#allocation2 + $0x5c8] sm:$0xff]
    %v1089 = vld [vmem:[#allocation2 + $0x5d0] sm:$0xff]
    %v1090 = vld [vmem:[#allocation2 + $0x5d8] sm:$0xff]
    %v1091 = vld [vmem:[#allocation2 + $0x5e0] sm:$0xff]
    %v1092 = vld [vmem:[#allocation2 + $0x5e8] sm:$0xff]
    %v1093 = vld [vmem:[#allocation2 + $0x5f0] sm:$0xff]
    %v1094 = vld [vmem:[#allocation2 + $0x5f8] sm:$0xff]
    %1095 = vmatprep.subr.mxu0 0.0
    %1096 = vmatpush1.msra.mxu0 %v1079
    %1097 = vmatprep.subr.mxu0 0.0
    %1098 = vmatpush1.msra.mxu0 %v1080
    %1099 = vmatprep.subr.mxu0 0.0
    %1100 = vmatpush1.msra.mxu0 %v1081
    %1101 = vmatprep.subr.mxu0 0.0
    %1102 = vmatpush1.msra.mxu0 %v1082
    %1103 = vmatprep.subr.mxu0 0.0
    %1104 = vmatpush1.msra.mxu0 %v1083
    %1105 = vmatprep.subr.mxu0 0.0
    %1106 = vmatpush1.msra.mxu0 %v1084
    %1107 = vmatprep.subr.mxu0 0.0
    %1108 = vmatpush1.msra.mxu0 %v1085
    %1109 = vmatprep.subr.mxu0 0.0
    %1110 = vmatpush1.msra.mxu0 %v1086
    %1111 = vmatprep.subr.mxu0 0.0
    %1112 = vmatpush1.msra.mxu0 %v1087
    %1113 = vmatprep.subr.mxu0 0.0
    %1114 = vmatpush1.msra.mxu0 %v1088
    %1115 = vmatprep.subr.mxu0 0.0
    %1116 = vmatpush1.msra.mxu0 %v1089
    %1117 = vmatprep.subr.mxu0 0.0
    %1118 = vmatpush1.msra.mxu0 %v1090
    %1119 = vmatprep.subr.mxu0 0.0
    %1120 = vmatpush1.msra.mxu0 %v1091
    %1121 = vmatprep.subr.mxu0 0.0
    %1122 = vmatpush1.msra.mxu0 %v1092
    %1123 = vmatprep.subr.mxu0 0.0
    %1124 = vmatpush1.msra.mxu0 %v1093
    %1125 = vmatprep.subr.mxu0 0.0
    %1126 = vmatpush1.msra.mxu0 %v1094
    %1127 = vmatprep.subr.mxu0 0.0
    %1128 = vmatpush1.msra.mxu0 0.0
    %1129 = vmatprep.subr.mxu0 0.0
    %1130 = vmatpush1.msra.mxu0 0.0
    %1131 = vmatprep.subr.mxu0 0.0
    %1132 = vmatpush1.msra.mxu0 0.0
    %1133 = vmatprep.subr.mxu0 0.0
    %1134 = vmatpush1.msra.mxu0 0.0
    %1135 = vmatprep.subr.mxu0 0.0
    %1136 = vmatpush1.msra.mxu0 0.0
    %1137 = vmatprep.subr.mxu0 0.0
    %1138 = vmatpush1.msra.mxu0 0.0
    %1139 = vmatprep.subr.mxu0 0.0
    %1140 = vmatpush1.msra.mxu0 0.0
    %1141 = vmatprep.subr.mxu0 0.0
    %1142 = vmatpush1.msra.mxu0 0.0
    %1143 = vmatprep.subr.mxu0 0.0
    %1144 = vmatpush1.msra.mxu0 0.0
    %1145 = vmatprep.subr.mxu0 0.0
    %1146 = vmatpush1.msra.mxu0 0.0
    %1147 = vmatprep.subr.mxu0 0.0
    %1148 = vmatpush1.msra.mxu0 0.0
    %1149 = vmatprep.subr.mxu0 0.0
    %1150 = vmatpush1.msra.mxu0 0.0
    %1151 = vmatprep.subr.mxu0 0.0
    %1152 = vmatpush1.msra.mxu0 0.0
    %1153 = vmatprep.subr.mxu0 0.0
    %1154 = vmatpush1.msra.mxu0 0.0
    %1155 = vmatprep.subr.mxu0 0.0
    %1156 = vmatpush1.msra.mxu0 0.0
    %1157 = vmatprep.subr.mxu0 0.0
    %1158 = vmatpush1.msra.mxu0 0.0
    %1159 = vmatprep.mubr.f32.mxu0 0.0
    %1160 = vmatmul.mubr.f32.gmra.mrb[0].mxu0 %v1061
    %v1161 = vpop.f32.mrb[0].mxu0
    %v1162 = vadd.f32 0.0, %v1161
    %v1163 = vpop.f32.mrb[0].mxu0
    %1164 = vmatprep.mubr.f32.mxu0 0.0
    %1165 = vmatmul.mubr.f32.gmra.mrb[0].mxu0 %v1062
    %v1166 = vpop.f32.mrb[0].mxu0
    %v1167 = vadd.f32 0.0, %v1166
    %v1168 = vpop.f32.mrb[0].mxu0
    %1169 = vmatprep.mubr.f32.mxu0 0.0
    %1170 = vmatmul.mubr.f32.gmra.mrb[0].mxu0 %v1063
    %v1171 = vpop.f32.mrb[0].mxu0
    %v1172 = vadd.f32 0.0, %v1171
    %v1173 = vpop.f32.mrb[0].mxu0
    %1174 = vmatprep.mubr.f32.mxu0 0.0
    %1175 = vmatmul.mubr.f32.gmra.mrb[0].mxu0 %v1064
    %v1176 = vpop.f32.mrb[0].mxu0
    %v1177 = vadd.f32 0.0, %v1176
    %v1178 = vpop.f32.mrb[0].mxu0
    %1179 = vmatprep.mubr.f32.mxu0 0.0
    %1180 = vmatmul.mubr.f32.gmra.mrb[0].mxu0 %v1065
    %v1181 = vpop.f32.mrb[0].mxu0
    %v1182 = vadd.f32 0.0, %v1181
    %v1183 = vpop.f32.mrb[0].mxu0
    %1184 = vmatprep.mubr.f32.mxu0 0.0
    %1185 = vmatmul.mubr.f32.gmra.mrb[0].mxu0 %v1066
    %v1186 = vpop.f32.mrb[0].mxu0
    %v1187 = vadd.f32 0.0, %v1186
    %v1188 = vpop.f32.mrb[0].mxu0
    %1189 = vmatprep.mubr.f32.mxu0 0.0
    %1190 = vmatmul.mubr.f32.gmra.mrb[0].mxu0 %v1067
    %v1191 = vpop.f32.mrb[0].mxu0
    %v1192 = vadd.f32 0.0, %v1191
    %v1193 = vpop.f32.mrb[0].mxu0
    %1194 = vmatprep.mubr.f32.mxu0 0.0
    %1195 = vmatmul.mubr.f32.gmra.mrb[0].mxu0 %v1068
    %v1196 = vpop.f32.mrb[0].mxu0
    %v1197 = vadd.f32 0.0, %v1196
    %v1198 = vpop.f32.mrb[0].mxu0
    %1199 = vmatprep.mubr.f32.mxu0 0.0
    %1200 = vmatmul.mubr.f32.gmra.mrb[0].mxu0 %v1069
    %v1201 = vpop.f32.mrb[0].mxu0
    %v1202 = vadd.f32 0.0, %v1201
    %v1203 = vpop.f32.mrb[0].mxu0
    %1204 = vmatprep.mubr.f32.mxu0 0.0
    %1205 = vmatmul.mubr.f32.gmra.mrb[0].mxu0 %v1070
    %v1206 = vpop.f32.mrb[0].mxu0
    %v1207 = vadd.f32 0.0, %v1206
    %v1208 = vpop.f32.mrb[0].mxu0
    %1209 = vmatprep.mubr.f32.mxu0 0.0
    %1210 = vmatmul.mubr.f32.gmra.mrb[0].mxu0 %v1071
    %v1211 = vpop.f32.mrb[0].mxu0
    %v1212 = vadd.f32 0.0, %v1211
    %v1213 = vpop.f32.mrb[0].mxu0
    %1214 = vmatprep.mubr.f32.mxu0 0.0
    %1215 = vmatmul.mubr.f32.gmra.mrb[0].mxu0 %v1072
    %v1216 = vpop.f32.mrb[0].mxu0
    %v1217 = vadd.f32 0.0, %v1216
    %v1218 = vpop.f32.mrb[0].mxu0
    %1219 = vmatprep.mubr.f32.mxu0 0.0
    %1220 = vmatmul.mubr.f32.gmra.mrb[0].mxu0 %v1073
    %v1221 = vpop.f32.mrb[0].mxu0
    %v1222 = vadd.f32 0.0, %v1221
    %v1223 = vpop.f32.mrb[0].mxu0
    %1224 = vmatprep.mubr.f32.mxu0 0.0
    %1225 = vmatmul.mubr.f32.gmra.mrb[0].mxu0 %v1074
    %v1226 = vpop.f32.mrb[0].mxu0
    %v1227 = vadd.f32 0.0, %v1226
    %v1228 = vpop.f32.mrb[0].mxu0
    %1229 = vmatprep.mubr.f32.mxu0 0.0
    %1230 = vmatmul.mubr.f32.gmra.mrb[0].mxu0 %v1075
    %v1231 = vpop.f32.mrb[0].mxu0
    %v1232 = vadd.f32 0.0, %v1231
    %v1233 = vpop.f32.mrb[0].mxu0
    %1234 = vmatprep.mubr.f32.mxu0 0.0
    %1235 = vmatmul.mubr.f32.gmra.mrb[0].mxu0 %v1076
    %v1236 = vpop.f32.mrb[0].mxu0
    %v1237 = vadd.f32 0.0, %v1236
    %v1238 = vpop.f32.mrb[0].mxu0
    %1239 = vmatprep.mubr.f32.mxu0 0.0
    %1240 = vmatmul.mubr.f32.gmra.mrb[0].mxu0 %v1077
    %v1241 = vpop.f32.mrb[0].mxu0
    %v1242 = vadd.f32 0.0, %v1241
    %v1243 = vpop.f32.mrb[0].mxu0
    %1244 = vmatprep.mubr.f32.mxu0 0.0
    %1245 = vmatmul.mubr.f32.gmra.mrb[0].mxu0 %v1078
    %v1246 = vpop.f32.mrb[0].mxu0
    %v1247 = vadd.f32 0.0, %v1246
    %v1248 = vpop.f32.mrb[0].mxu0
    %1249 = vdwg.mxu0
    %v1250 = vmax.f32 %v1162, %v1172
    %v1251 = vmax.f32 %v1167, %v1177
    %v1252 = vmax.f32 %v1250, %v1182
    %v1253 = vmax.f32 %v1251, %v1187
    %v1254 = vsub.f32 %v1162, %v1252
    %v1255 = vsub.f32 %v1167, %v1253
    %v1256 = vmul.f32 %v1254, 1.442695
    %v1257 = vpow.pop %v1256
    %v1258 = vmul.f32 %v1255, 1.442695
    %v1259 = vpow.pop %v1258
    %v1260 = vsub.f32 %v1172, %v1252
    %v1261 = vsub.f32 %v1177, %v1253
    %v1262 = vmul.f32 %v1260, 1.442695
    %v1263 = vpow.pop %v1262
    %v1264 = vmul.f32 %v1261, 1.442695
    %v1265 = vpow.pop %v1264
    %v1266 = vsub.f32 %v1182, %v1252
    %v1267 = vsub.f32 %v1187, %v1253
    %v1268 = vmul.f32 %v1266, 1.442695
    %v1269 = vpow.pop %v1268
    %v1270 = vmul.f32 %v1267, 1.442695
    %v1271 = vpow.pop %v1270
    %v1272 = vadd.f32 %v1257, %v1263
    %v1273 = vadd.f32 %v1259, %v1265
    %v1274 = vadd.f32 %v1272, %v1269
    %v1275 = vadd.f32 %v1273, %v1271
    %v1276 = vrcp.pop %v1274
    %v1277 = vrcp.pop %v1275
    %v1278 = vmul.f32 %v1257, %v1276
    %v1279 = vmul.f32 %v1259, %v1277
    %v1280 = vmul.f32 %v1263, %v1276
    %v1281 = vmul.f32 %v1265, %v1277
    %v1282 = vmul.f32 %v1269, %v1276
    %v1283 = vmul.f32 %v1271, %v1277
    %v1284 = vmax.f32 %v1192, %v1202
    %v1285 = vmax.f32 %v1197, %v1207
    %v1286 = vmax.f32 %v1284, %v1212
    %v1287 = vmax.f32 %v1285, %v1217
    %v1288 = vsub.f32 %v1192, %v1286
    %v1289 = vsub.f32 %v1197, %v1287
    %v1290 = vmul.f32 %v1288, 1.442695
    %v1291 = vpow.pop %v1290
    %v1292 = vmul.f32 %v1289, 1.442695
    %v1293 = vpow.pop %v1292
    %v1294 = vsub.f32 %v1202, %v1286
    %v1295 = vsub.f32 %v1207, %v1287
    %v1296 = vmul.f32 %v1294, 1.442695
    %v1297 = vpow.pop %v1296
    %v1298 = vmul.f32 %v1295, 1.442695
    %v1299 = vpow.pop %v1298
    %v1300 = vsub.f32 %v1212, %v1286
    %v1301 = vsub.f32 %v1217, %v1287
    %v1302 = vmul.f32 %v1300, 1.442695
    %v1303 = vpow.pop %v1302
    %v1304 = vmul.f32 %v1301, 1.442695
    %v1305 = vpow.pop %v1304
    %v1306 = vadd.f32 %v1291, %v1297
    %v1307 = vadd.f32 %v1293, %v1299
    %v1308 = vadd.f32 %v1306, %v1303
    %v1309 = vadd.f32 %v1307, %v1305
    %v1310 = vrcp.pop %v1308
    %v1311 = vrcp.pop %v1309
    %v1312 = vmul.f32 %v1291, %v1310
    %v1313 = vmul.f32 %v1293, %v1311
    %v1314 = vmul.f32 %v1297, %v1310
    %v1315 = vmul.f32 %v1299, %v1311
    %v1316 = vmul.f32 %v1303, %v1310
    %v1317 = vmul.f32 %v1305, %v1311
    %v1318 = vmax.f32 %v1222, %v1232
    %v1319 = vmax.f32 %v1227, %v1237
    %v1320 = vmax.f32 %v1318, %v1242
    %v1321 = vmax.f32 %v1319, %v1247
    %v1322 = vsub.f32 %v1222, %v1320
    %v1323 = vsub.f32 %v1227, %v1321
    %v1324 = vmul.f32 %v1322, 1.442695
    %v1325 = vpow.pop %v1324
    %v1326 = vmul.f32 %v1323, 1.442695
    %v1327 = vpow.pop %v1326
    %v1328 = vsub.f32 %v1232, %v1320
    %v1329 = vsub.f32 %v1237, %v1321
    %v1330 = vmul.f32 %v1328, 1.442695
    %v1331 = vpow.pop %v1330
    %v1332 = vmul.f32 %v1329, 1.442695
    %v1333 = vpow.pop %v1332
    %v1334 = vsub.f32 %v1242, %v1320
    %v1335 = vsub.f32 %v1247, %v1321
    %v1336 = vmul.f32 %v1334, 1.442695
    %v1337 = vpow.pop %v1336
    %v1338 = vmul.f32 %v1335, 1.442695
    %v1339 = vpow.pop %v1338
    %v1340 = vadd.f32 %v1325, %v1331
    %v1341 = vadd.f32 %v1327, %v1333
    %v1342 = vadd.f32 %v1340, %v1337
    %v1343 = vadd.f32 %v1341, %v1339
    %v1344 = vrcp.pop %v1342
    %v1345 = vrcp.pop %v1343
    %v1346 = vmul.f32 %v1325, %v1344
    %v1347 = vmul.f32 %v1327, %v1345
    %v1348 = vmul.f32 %v1331, %v1344
    %v1349 = vmul.f32 %v1333, %v1345
    %v1350 = vmul.f32 %v1337, %v1344
    %v1351 = vmul.f32 %v1339, %v1345
    %v1352 = vld [vmem:[#allocation2 + $0x600] sm:$0xff]
    %v1353 = vld [vmem:[#allocation2 + $0x608] sm:$0xff]
    %v1354 = vld [vmem:[#allocation2 + $0x610] sm:$0xff]
    %v1355 = vld [vmem:[#allocation2 + $0x618] sm:$0xff]
    %v1356 = vld [vmem:[#allocation2 + $0x620] sm:$0xff]
    %v1357 = vld [vmem:[#allocation2 + $0x628] sm:$0xff]
    %v1358 = vld [vmem:[#allocation2 + $0x630] sm:$0xff]
    %v1359 = vld [vmem:[#allocation2 + $0x638] sm:$0xff]
    %v1360 = vld [vmem:[#allocation2 + $0x640] sm:$0xff]
    %v1361 = vld [vmem:[#allocation2 + $0x648] sm:$0xff]
    %v1362 = vld [vmem:[#allocation2 + $0x650] sm:$0xff]
    %v1363 = vld [vmem:[#allocation2 + $0x658] sm:$0xff]
    %v1364 = vld [vmem:[#allocation2 + $0x660] sm:$0xff]
    %v1365 = vld [vmem:[#allocation2 + $0x668] sm:$0xff]
    %v1366 = vld [vmem:[#allocation2 + $0x670] sm:$0xff]
    %v1367 = vld [vmem:[#allocation2 + $0x678] sm:$0xff]
    %1368 = vmatprep.subr.mxu0 0.0
    %1369 = vmatpush1.msra.mxu0 %v1352
    %1370 = vmatprep.subr.mxu0 0.0
    %1371 = vmatpush1.msra.mxu0 %v1353
    %1372 = vmatprep.subr.mxu0 0.0
    %1373 = vmatpush1.msra.mxu0 %v1354
    %1374 = vmatprep.subr.mxu0 0.0
    %1375 = vmatpush1.msra.mxu0 %v1355
    %1376 = vmatprep.subr.mxu0 0.0
    %1377 = vmatpush1.msra.mxu0 %v1356
    %1378 = vmatprep.subr.mxu0 0.0
    %1379 = vmatpush1.msra.mxu0 %v1357
    %1380 = vmatprep.subr.mxu0 0.0
    %1381 = vmatpush1.msra.mxu0 %v1358
    %1382 = vmatprep.subr.mxu0 0.0
    %1383 = vmatpush1.msra.mxu0 %v1359
    %1384 = vmatprep.subr.mxu0 0.0
    %1385 = vmatpush1.msra.mxu0 %v1360
    %1386 = vmatprep.subr.mxu0 0.0
    %1387 = vmatpush1.msra.mxu0 %v1361
    %1388 = vmatprep.subr.mxu0 0.0
    %1389 = vmatpush1.msra.mxu0 %v1362
    %1390 = vmatprep.subr.mxu0 0.0
    %1391 = vmatpush1.msra.mxu0 %v1363
    %1392 = vmatprep.subr.mxu0 0.0
    %1393 = vmatpush1.msra.mxu0 %v1364
    %1394 = vmatprep.subr.mxu0 0.0
    %1395 = vmatpush1.msra.mxu0 %v1365
    %1396 = vmatprep.subr.mxu0 0.0
    %1397 = vmatpush1.msra.mxu0 %v1366
    %1398 = vmatprep.subr.mxu0 0.0
    %1399 = vmatpush1.msra.mxu0 %v1367
    %1400 = vmatprep.subr.mxu0 0.0
    %1401 = vmatpush1.msra.mxu0 0.0
    %1402 = vmatprep.subr.mxu0 0.0
    %1403 = vmatpush1.msra.mxu0 0.0
    %1404 = vmatprep.subr.mxu0 0.0
    %1405 = vmatpush1.msra.mxu0 0.0
    %1406 = vmatprep.subr.mxu0 0.0
    %1407 = vmatpush1.msra.mxu0 0.0
    %1408 = vmatprep.subr.mxu0 0.0
    %1409 = vmatpush1.msra.mxu0 0.0
    %1410 = vmatprep.subr.mxu0 0.0
    %1411 = vmatpush1.msra.mxu0 0.0
    %1412 = vmatprep.subr.mxu0 0.0
    %1413 = vmatpush1.msra.mxu0 0.0
    %1414 = vmatprep.subr.mxu0 0.0
    %1415 = vmatpush1.msra.mxu0 0.0
    %1416 = vmatprep.subr.mxu0 0.0
    %1417 = vmatpush1.msra.mxu0 0.0
    %1418 = vmatprep.subr.mxu0 0.0
    %1419 = vmatpush1.msra.mxu0 0.0
    %1420 = vmatprep.subr.mxu0 0.0
    %1421 = vmatpush1.msra.mxu0 0.0
    %1422 = vmatprep.subr.mxu0 0.0
    %1423 = vmatpush1.msra.mxu0 0.0
    %1424 = vmatprep.subr.mxu0 0.0
    %1425 = vmatpush1.msra.mxu0 0.0
    %1426 = vmatprep.subr.mxu0 0.0
    %1427 = vmatpush1.msra.mxu0 0.0
    %1428 = vmatprep.subr.mxu0 0.0
    %1429 = vmatpush1.msra.mxu0 0.0
    %1430 = vmatprep.subr.mxu0 0.0
    %1431 = vmatpush1.msra.mxu0 0.0
    %1432 = vmatprep.mubr.f32.mxu0 0.0
    %1433 = vmatmul.mubr.f32.gmra.mrb[0].mxu0 %v1278
    %v1434 = vpop.f32.mrb[0].mxu0
    %v1435 = vadd.f32 0.0, %v1434
    %v1436 = vpop.f32.mrb[0].mxu0
    %1437 = vmatprep.mubr.f32.mxu0 0.0
    %1438 = vmatmul.mubr.f32.gmra.mrb[0].mxu0 %v1279
    %v1439 = vpop.f32.mrb[0].mxu0
    %v1440 = vadd.f32 0.0, %v1439
    %v1441 = vpop.f32.mrb[0].mxu0
    %1442 = vmatprep.mubr.f32.mxu0 0.0
    %1443 = vmatmul.mubr.f32.gmra.mrb[0].mxu0 %v1280
    %v1444 = vpop.f32.mrb[0].mxu0
    %v1445 = vadd.f32 0.0, %v1444
    %v1446 = vpop.f32.mrb[0].mxu0
    %1447 = vmatprep.mubr.f32.mxu0 0.0
    %1448 = vmatmul.mubr.f32.gmra.mrb[0].mxu0 %v1281
    %v1449 = vpop.f32.mrb[0].mxu0
    %v1450 = vadd.f32 0.0, %v1449
    %v1451 = vpop.f32.mrb[0].mxu0
    %1452 = vmatprep.mubr.f32.mxu0 0.0
    %1453 = vmatmul.mubr.f32.gmra.mrb[0].mxu0 %v1282
    %v1454 = vpop.f32.mrb[0].mxu0
    %v1455 = vadd.f32 0.0, %v1454
    %v1456 = vpop.f32.mrb[0].mxu0
    %1457 = vmatprep.mubr.f32.mxu0 0.0
    %1458 = vmatmul.mubr.f32.gmra.mrb[0].mxu0 %v1283
    %v1459 = vpop.f32.mrb[0].mxu0
    %v1460 = vadd.f32 0.0, %v1459
    %v1461 = vpop.f32.mrb[0].mxu0
    %1462 = vmatprep.mubr.f32.mxu0 0.0
    %1463 = vmatmul.mubr.f32.gmra.mrb[0].mxu0 %v1312
    %v1464 = vpop.f32.mrb[0].mxu0
    %v1465 = vadd.f32 0.0, %v1464
    %v1466 = vpop.f32.mrb[0].mxu0
    %1467 = vmatprep.mubr.f32.mxu0 0.0
    %1468 = vmatmul.mubr.f32.gmra.mrb[0].mxu0 %v1313
    %v1469 = vpop.f32.mrb[0].mxu0
    %v1470 = vadd.f32 0.0, %v1469
    %v1471 = vpop.f32.mrb[0].mxu0
    %1472 = vmatprep.mubr.f32.mxu0 0.0
    %1473 = vmatmul.mubr.f32.gmra.mrb[0].mxu0 %v1314
    %v1474 = vpop.f32.mrb[0].mxu0
    %v1475 = vadd.f32 0.0, %v1474
    %v1476 = vpop.f32.mrb[0].mxu0
    %1477 = vmatprep.mubr.f32.mxu0 0.0
    %1478 = vmatmul.mubr.f32.gmra.mrb[0].mxu0 %v1315
    %v1479 = vpop.f32.mrb[0].mxu0
    %v1480 = vadd.f32 0.0, %v1479
    %v1481 = vpop.f32.mrb[0].mxu0
    %1482 = vmatprep.mubr.f32.mxu0 0.0
    %1483 = vmatmul.mubr.f32.gmra.mrb[0].mxu0 %v1316
    %v1484 = vpop.f32.mrb[0].mxu0
    %v1485 = vadd.f32 0.0, %v1484
    %v1486 = vpop.f32.mrb[0].mxu0
    %1487 = vmatprep.mubr.f32.mxu0 0.0
    %1488 = vmatmul.mubr.f32.gmra.mrb[0].mxu0 %v1317
    %v1489 = vpop.f32.mrb[0].mxu0
    %v1490 = vadd.f32 0.0, %v1489
    %v1491 = vpop.f32.mrb[0].mxu0
    %1492 = vmatprep.mubr.f32.mxu0 0.0
    %1493 = vmatmul.mubr.f32.gmra.mrb[0].mxu0 %v1346
    %v1494 = vpop.f32.mrb[0].mxu0
    %v1495 = vadd.f32 0.0, %v1494
    %v1496 = vpop.f32.mrb[0].mxu0
    %1497 = vmatprep.mubr.f32.mxu0 0.0
    %1498 = vmatmul.mubr.f32.gmra.mrb[0].mxu0 %v1347
    %v1499 = vpop.f32.mrb[0].mxu0
    %v1500 = vadd.f32 0.0, %v1499
    %v1501 = vpop.f32.mrb[0].mxu0
    %1502 = vmatprep.mubr.f32.mxu0 0.0
    %1503 = vmatmul.mubr.f32.gmra.mrb[0].mxu0 %v1348
    %v1504 = vpop.f32.mrb[0].mxu0
    %v1505 = vadd.f32 0.0, %v1504
    %v1506 = vpop.f32.mrb[0].mxu0
    %1507 = vmatprep.mubr.f32.mxu0 0.0
    %1508 = vmatmul.mubr.f32.gmra.mrb[0].mxu0 %v1349
    %v1509 = vpop.f32.mrb[0].mxu0
    %v1510 = vadd.f32 0.0, %v1509
    %v1511 = vpop.f32.mrb[0].mxu0
    %1512 = vmatprep.mubr.f32.mxu0 0.0
    %1513 = vmatmul.mubr.f32.gmra.mrb[0].mxu0 %v1350
    %v1514 = vpop.f32.mrb[0].mxu0
    %v1515 = vadd.f32 0.0, %v1514
    %v1516 = vpop.f32.mrb[0].mxu0
    %1517 = vmatprep.mubr.f32.mxu0 0.0
    %1518 = vmatmul.mubr.f32.gmra.mrb[0].mxu0 %v1351
    %v1519 = vpop.f32.mrb[0].mxu0
    %v1520 = vadd.f32 0.0, %v1519
    %v1521 = vpop.f32.mrb[0].mxu0
    %1522 = vdwg.mxu0
    %v1523 = vmul.f32 %v1435, %v1033
    %v1524 = vmul.f32 %v1440, %v1038
    %v1525 = vmul.f32 %v1445, %v1043
    %v1526 = vmul.f32 %v1450, %v1048
    %v1527 = vadd.f32 %v1523, %v1525
    %v1528 = vadd.f32 %v1524, %v1526
    %v1529 = vmul.f32 %v1455, %v1053
    %v1530 = vmul.f32 %v1460, %v1058
    %v1531 = vadd.f32 %v1527, %v1529
    %v1532 = vadd.f32 %v1528, %v1530
    %v1533 = vmul.f32 %v1465, %v1033
    %v1534 = vmul.f32 %v1470, %v1038
    %v1535 = vmul.f32 %v1475, %v1043
    %v1536 = vmul.f32 %v1480, %v1048
    %v1537 = vadd.f32 %v1533, %v1535
    %v1538 = vadd.f32 %v1534, %v1536
    %v1539 = vmul.f32 %v1485, %v1053
    %v1540 = vmul.f32 %v1490, %v1058
    %v1541 = vadd.f32 %v1537, %v1539
    %v1542 = vadd.f32 %v1538, %v1540
    %v1543 = vmul.f32 %v1495, %v1033
    %v1544 = vmul.f32 %v1500, %v1038
    %v1545 = vmul.f32 %v1505, %v1043
    %v1546 = vmul.f32 %v1510, %v1048
    %v1547 = vadd.f32 %v1543, %v1545
    %v1548 = vadd.f32 %v1544, %v1546
    %v1549 = vmul.f32 %v1515, %v1053
    %v1550 = vmul.f32 %v1520, %v1058
    %v1551 = vadd.f32 %v1547, %v1549
    %v1552 = vadd.f32 %v1548, %v1550
    %v1553 = vld [vmem:[#allocation2 + $0x500] sm:$0xff]
    %v1554 = vld [vmem:[#allocation2 + $0x508] sm:$0xff]
    %v1555 = vld [vmem:[#allocation2 + $0x510] sm:$0xff]
    %v1556 = vld [vmem:[#allocation2 + $0x518] sm:$0xff]
    %v1557 = vld [vmem:[#allocation2 + $0x520] sm:$0xff]
    %v1558 = vld [vmem:[#allocation2 + $0x528] sm:$0xff]
    %v1559 = vld [vmem:[#allocation2 + $0x530] sm:$0xff]
    %v1560 = vld [vmem:[#allocation2 + $0x538] sm:$0xff]
    %v1561 = vld [vmem:[#allocation2 + $0x540] sm:$0xff]
    %v1562 = vld [vmem:[#allocation2 + $0x548] sm:$0xff]
    %v1563 = vld [vmem:[#allocation2 + $0x550] sm:$0xff]
    %v1564 = vld [vmem:[#allocation2 + $0x558] sm:$0xff]
    %v1565 = vld [vmem:[#allocation2 + $0x560] sm:$0xff]
    %v1566 = vld [vmem:[#allocation2 + $0x568] sm:$0xff]
    %v1567 = vld [vmem:[#allocation2 + $0x570] sm:$0xff]
    %v1568 = vld [vmem:[#allocation2 + $0x578] sm:$0xff]
    %v1569 = vld [vmem:[#allocation2 + $0x9d0] sm:$0x1]
    %v1570 = vlaneseq
    %v1571 = vshrl.u32 %v1570, 7
    %v1572 = vsub.s32 0, %v1571
    %v1573 = vrot.slane %v1569, %v1572
    %1574 = vmatprep.subr.mxu0 0.0
    %1575 = vmatpush1.msra.mxu0 %v1553
    %1576 = vmatprep.subr.mxu0 0.0
    %1577 = vmatpush1.msra.mxu0 %v1554
    %1578 = vmatprep.subr.mxu0 0.0
    %1579 = vmatpush1.msra.mxu0 %v1555
    %1580 = vmatprep.subr.mxu0 0.0
    %1581 = vmatpush1.msra.mxu0 %v1556
    %1582 = vmatprep.subr.mxu0 0.0
    %1583 = vmatpush1.msra.mxu0 %v1557
    %1584 = vmatprep.subr.mxu0 0.0
    %1585 = vmatpush1.msra.mxu0 %v1558
    %1586 = vmatprep.subr.mxu0 0.0
    %1587 = vmatpush1.msra.mxu0 %v1559
    %1588 = vmatprep.subr.mxu0 0.0
    %1589 = vmatpush1.msra.mxu0 %v1560
    %1590 = vmatprep.subr.mxu0 0.0
    %1591 = vmatpush1.msra.mxu0 %v1561
    %1592 = vmatprep.subr.mxu0 0.0
    %1593 = vmatpush1.msra.mxu0 %v1562
    %1594 = vmatprep.subr.mxu0 0.0
    %1595 = vmatpush1.msra.mxu0 %v1563
    %1596 = vmatprep.subr.mxu0 0.0
    %1597 = vmatpush1.msra.mxu0 %v1564
    %1598 = vmatprep.subr.mxu0 0.0
    %1599 = vmatpush1.msra.mxu0 %v1565
    %1600 = vmatprep.subr.mxu0 0.0
    %1601 = vmatpush1.msra.mxu0 %v1566
    %1602 = vmatprep.subr.mxu0 0.0
    %1603 = vmatpush1.msra.mxu0 %v1567
    %1604 = vmatprep.subr.mxu0 0.0
    %1605 = vmatpush1.msra.mxu0 %v1568
    %1606 = vmatprep.subr.mxu0 0.0
    %1607 = vmatpush1.msra.mxu0 0.0
    %1608 = vmatprep.subr.mxu0 0.0
    %1609 = vmatpush1.msra.mxu0 0.0
    %1610 = vmatprep.subr.mxu0 0.0
    %1611 = vmatpush1.msra.mxu0 0.0
    %1612 = vmatprep.subr.mxu0 0.0
    %1613 = vmatpush1.msra.mxu0 0.0
    %1614 = vmatprep.subr.mxu0 0.0
    %1615 = vmatpush1.msra.mxu0 0.0
    %1616 = vmatprep.subr.mxu0 0.0
    %1617 = vmatpush1.msra.mxu0 0.0
    %1618 = vmatprep.subr.mxu0 0.0
    %1619 = vmatpush1.msra.mxu0 0.0
    %1620 = vmatprep.subr.mxu0 0.0
    %1621 = vmatpush1.msra.mxu0 0.0
    %1622 = vmatprep.subr.mxu0 0.0
    %1623 = vmatpush1.msra.mxu0 0.0
    %1624 = vmatprep.subr.mxu0 0.0
    %1625 = vmatpush1.msra.mxu0 0.0
    %1626 = vmatprep.subr.mxu0 0.0
    %1627 = vmatpush1.msra.mxu0 0.0
    %1628 = vmatprep.subr.mxu0 0.0
    %1629 = vmatpush1.msra.mxu0 0.0
    %1630 = vmatprep.subr.mxu0 0.0
    %1631 = vmatpush1.msra.mxu0 0.0
    %1632 = vmatprep.subr.mxu0 0.0
    %1633 = vmatpush1.msra.mxu0 0.0
    %1634 = vmatprep.subr.mxu0 0.0
    %1635 = vmatpush1.msra.mxu0 0.0
    %1636 = vmatprep.subr.mxu0 0.0
    %1637 = vmatpush1.msra.mxu0 0.0
    %1638 = vmatprep.mubr.f32.mxu0 0.0
    %1639 = vmatmul.mubr.f32.gmra.mrb[0].mxu0 %v1531
    %v1640 = vpop.f32.mrb[0].mxu0
    %v1641 = vadd.f32 %v1573, %v1640
    %v1642 = vpop.f32.mrb[0].mxu0
    %1643 = vmatprep.mubr.f32.mxu0 0.0
    %1644 = vmatmul.mubr.f32.gmra.mrb[0].mxu0 %v1532
    %v1645 = vpop.f32.mrb[0].mxu0
    %v1646 = vadd.f32 %v1573, %v1645
    %v1647 = vpop.f32.mrb[0].mxu0
    %1648 = vmatprep.mubr.f32.mxu0 0.0
    %1649 = vmatmul.mubr.f32.gmra.mrb[0].mxu0 %v1541
    %v1650 = vpop.f32.mrb[0].mxu0
    %v1651 = vadd.f32 %v1573, %v1650
    %v1652 = vpop.f32.mrb[0].mxu0
    %1653 = vmatprep.mubr.f32.mxu0 0.0
    %1654 = vmatmul.mubr.f32.gmra.mrb[0].mxu0 %v1542
    %v1655 = vpop.f32.mrb[0].mxu0
    %v1656 = vadd.f32 %v1573, %v1655
    %v1657 = vpop.f32.mrb[0].mxu0
    %1658 = vmatprep.mubr.f32.mxu0 0.0
    %1659 = vmatmul.mubr.f32.gmra.mrb[0].mxu0 %v1551
    %v1660 = vpop.f32.mrb[0].mxu0
    %v1661 = vadd.f32 %v1573, %v1660
    %v1662 = vpop.f32.mrb[0].mxu0
    %1663 = vmatprep.mubr.f32.mxu0 0.0
    %1664 = vmatmul.mubr.f32.gmra.mrb[0].mxu0 %v1552
    %v1665 = vpop.f32.mrb[0].mxu0
    %v1666 = vadd.f32 %v1573, %v1665
    %v1667 = vpop.f32.mrb[0].mxu0
    %1668 = vdwg.mxu0
    %v1669 = vadd.f32 %v319, %v1641
    %v1670 = vadd.f32 %v320, %v1646
    %v1671 = vadd.f32 %v613, %v1651
    %v1672 = vadd.f32 %v614, %v1656
    %v1673 = vadd.f32 %v711, %v1661
    %v1674 = vadd.f32 %v712, %v1666
    %v1675 = vld [vmem:[#allocation2 + $0x680] sm:$0xff]
    %v1676 = vld [vmem:[#allocation2 + $0x688] sm:$0xff]
    %v1677 = vld [vmem:[#allocation2 + $0x690] sm:$0xff]
    %v1678 = vld [vmem:[#allocation2 + $0x698] sm:$0xff]
    %v1679 = vld [vmem:[#allocation2 + $0x6a0] sm:$0xff]
    %v1680 = vld [vmem:[#allocation2 + $0x6a8] sm:$0xff]
    %v1681 = vld [vmem:[#allocation2 + $0x6b0] sm:$0xff]
    %v1682 = vld [vmem:[#allocation2 + $0x6b8] sm:$0xff]
    %v1683 = vld [vmem:[#allocation2 + $0x6c0] sm:$0xff]
    %v1684 = vld [vmem:[#allocation2 + $0x6c8] sm:$0xff]
    %v1685 = vld [vmem:[#allocation2 + $0x6d0] sm:$0xff]
    %v1686 = vld [vmem:[#allocation2 + $0x6d8] sm:$0xff]
    %v1687 = vld [vmem:[#allocation2 + $0x6e0] sm:$0xff]
    %v1688 = vld [vmem:[#allocation2 + $0x6e8] sm:$0xff]
    %v1689 = vld [vmem:[#allocation2 + $0x6f0] sm:$0xff]
    %v1690 = vld [vmem:[#allocation2 + $0x6f8] sm:$0xff]
    %v1691 = vld [vmem:[#allocation2 + $0x700] sm:$0xff]
    %v1692 = vld [vmem:[#allocation2 + $0x708] sm:$0xff]
    %v1693 = vld [vmem:[#allocation2 + $0x710] sm:$0xff]
    %v1694 = vld [vmem:[#allocation2 + $0x718] sm:$0xff]
    %v1695 = vld [vmem:[#allocation2 + $0x720] sm:$0xff]
    %v1696 = vld [vmem:[#allocation2 + $0x728] sm:$0xff]
    %v1697 = vld [vmem:[#allocation2 + $0x730] sm:$0xff]
    %v1698 = vld [vmem:[#allocation2 + $0x738] sm:$0xff]
    %v1699 = vld [vmem:[#allocation2 + $0x740] sm:$0xff]
    %v1700 = vld [vmem:[#allocation2 + $0x748] sm:$0xff]
    %v1701 = vld [vmem:[#allocation2 + $0x750] sm:$0xff]
    %v1702 = vld [vmem:[#allocation2 + $0x758] sm:$0xff]
    %v1703 = vld [vmem:[#allocation2 + $0x760] sm:$0xff]
    %v1704 = vld [vmem:[#allocation2 + $0x768] sm:$0xff]
    %v1705 = vld [vmem:[#allocation2 + $0x770] sm:$0xff]
    %v1706 = vld [vmem:[#allocation2 + $0x778] sm:$0xff]
    %1707 = vmatprep.subr.mxu0 0.0
    %1708 = vmatpush1.msra.mxu0 %v1691
    %1709 = vmatprep.subr.mxu0 0.0
    %1710 = vmatpush1.msra.mxu0 %v1692
    %1711 = vmatprep.subr.mxu0 0.0
    %1712 = vmatpush1.msra.mxu0 %v1693
    %1713 = vmatprep.subr.mxu0 0.0
    %1714 = vmatpush1.msra.mxu0 %v1694
    %1715 = vmatprep.subr.mxu0 0.0
    %1716 = vmatpush1.msra.mxu0 %v1695
    %1717 = vmatprep.subr.mxu0 0.0
    %1718 = vmatpush1.msra.mxu0 %v1696
    %1719 = vmatprep.subr.mxu0 0.0
    %1720 = vmatpush1.msra.mxu0 %v1697
    %1721 = vmatprep.subr.mxu0 0.0
    %1722 = vmatpush1.msra.mxu0 %v1698
    %1723 = vmatprep.subr.mxu0 0.0
    %1724 = vmatpush1.msra.mxu0 %v1699
    %1725 = vmatprep.subr.mxu0 0.0
    %1726 = vmatpush1.msra.mxu0 %v1700
    %1727 = vmatprep.subr.mxu0 0.0
    %1728 = vmatpush1.msra.mxu0 %v1701
    %1729 = vmatprep.subr.mxu0 0.0
    %1730 = vmatpush1.msra.mxu0 %v1702
    %1731 = vmatprep.subr.mxu0 0.0
    %1732 = vmatpush1.msra.mxu0 %v1703
    %1733 = vmatprep.subr.mxu0 0.0
    %1734 = vmatpush1.msra.mxu0 %v1704
    %1735 = vmatprep.subr.mxu0 0.0
    %1736 = vmatpush1.msra.mxu0 %v1705
    %1737 = vmatprep.subr.mxu0 0.0
    %1738 = vmatpush1.msra.mxu0 %v1706
    %1739 = vmatprep.subr.mxu0 0.0
    %1740 = vmatpush1.msra.mxu0 0.0
    %1741 = vmatprep.subr.mxu0 0.0
    %1742 = vmatpush1.msra.mxu0 0.0
    %1743 = vmatprep.subr.mxu0 0.0
    %1744 = vmatpush1.msra.mxu0 0.0
    %1745 = vmatprep.subr.mxu0 0.0
    %1746 = vmatpush1.msra.mxu0 0.0
    %1747 = vmatprep.subr.mxu0 0.0
    %1748 = vmatpush1.msra.mxu0 0.0
    %1749 = vmatprep.subr.mxu0 0.0
    %1750 = vmatpush1.msra.mxu0 0.0
    %1751 = vmatprep.subr.mxu0 0.0
    %1752 = vmatpush1.msra.mxu0 0.0
    %1753 = vmatprep.subr.mxu0 0.0
    %1754 = vmatpush1.msra.mxu0 0.0
    %1755 = vmatprep.subr.mxu0 0.0
    %1756 = vmatpush1.msra.mxu0 0.0
    %1757 = vmatprep.subr.mxu0 0.0
    %1758 = vmatpush1.msra.mxu0 0.0
    %1759 = vmatprep.subr.mxu0 0.0
    %1760 = vmatpush1.msra.mxu0 0.0
    %1761 = vmatprep.subr.mxu0 0.0
    %1762 = vmatpush1.msra.mxu0 0.0
    %1763 = vmatprep.subr.mxu0 0.0
    %1764 = vmatpush1.msra.mxu0 0.0
    %1765 = vmatprep.subr.mxu0 0.0
    %1766 = vmatpush1.msra.mxu0 0.0
    %1767 = vmatprep.subr.mxu0 0.0
    %1768 = vmatpush1.msra.mxu0 0.0
    %1769 = vmatprep.subr.mxu0 0.0
    %1770 = vmatpush1.msra.mxu0 0.0
    %1771 = vmatprep.mubr.f32.mxu0 0.0
    %1772 = vmatmul.mubr.f32.gmra.mrb[0].mxu0 %v1671
    %v1773 = vpop.f32.mrb[0].mxu0
    %v1774 = vadd.f32 0.0, %v1773
    %v1775 = vpop.f32.mrb[0].mxu0
    %1776 = vmatprep.mubr.f32.mxu0 0.0
    %1777 = vmatmul.mubr.f32.gmra.mrb[0].mxu0 %v1672
    %v1778 = vpop.f32.mrb[0].mxu0
    %v1779 = vadd.f32 0.0, %v1778
    %v1780 = vpop.f32.mrb[0].mxu0
    %1781 = vdwg.mxu0
    %1782 = vmatprep.subr.mxu0 0.0
    %1783 = vmatpush1.msra.mxu0 %v1675
    %1784 = vmatprep.subr.mxu0 0.0
    %1785 = vmatpush1.msra.mxu0 %v1676
    %1786 = vmatprep.subr.mxu0 0.0
    %1787 = vmatpush1.msra.mxu0 %v1677
    %1788 = vmatprep.subr.mxu0 0.0
    %1789 = vmatpush1.msra.mxu0 %v1678
    %1790 = vmatprep.subr.mxu0 0.0
    %1791 = vmatpush1.msra.mxu0 %v1679
    %1792 = vmatprep.subr.mxu0 0.0
    %1793 = vmatpush1.msra.mxu0 %v1680
    %1794 = vmatprep.subr.mxu0 0.0
    %1795 = vmatpush1.msra.mxu0 %v1681
    %1796 = vmatprep.subr.mxu0 0.0
    %1797 = vmatpush1.msra.mxu0 %v1682
    %1798 = vmatprep.subr.mxu0 0.0
    %1799 = vmatpush1.msra.mxu0 %v1683
    %1800 = vmatprep.subr.mxu0 0.0
    %1801 = vmatpush1.msra.mxu0 %v1684
    %1802 = vmatprep.subr.mxu0 0.0
    %1803 = vmatpush1.msra.mxu0 %v1685
    %1804 = vmatprep.subr.mxu0 0.0
    %1805 = vmatpush1.msra.mxu0 %v1686
    %1806 = vmatprep.subr.mxu0 0.0
    %1807 = vmatpush1.msra.mxu0 %v1687
    %1808 = vmatprep.subr.mxu0 0.0
    %1809 = vmatpush1.msra.mxu0 %v1688
    %1810 = vmatprep.subr.mxu0 0.0
    %1811 = vmatpush1.msra.mxu0 %v1689
    %1812 = vmatprep.subr.mxu0 0.0
    %1813 = vmatpush1.msra.mxu0 %v1690
    %1814 = vmatprep.subr.mxu0 0.0
    %1815 = vmatpush1.msra.mxu0 0.0
    %1816 = vmatprep.subr.mxu0 0.0
    %1817 = vmatpush1.msra.mxu0 0.0
    %1818 = vmatprep.subr.mxu0 0.0
    %1819 = vmatpush1.msra.mxu0 0.0
    %1820 = vmatprep.subr.mxu0 0.0
    %1821 = vmatpush1.msra.mxu0 0.0
    %1822 = vmatprep.subr.mxu0 0.0
    %1823 = vmatpush1.msra.mxu0 0.0
    %1824 = vmatprep.subr.mxu0 0.0
    %1825 = vmatpush1.msra.mxu0 0.0
    %1826 = vmatprep.subr.mxu0 0.0
    %1827 = vmatpush1.msra.mxu0 0.0
    %1828 = vmatprep.subr.mxu0 0.0
    %1829 = vmatpush1.msra.mxu0 0.0
    %1830 = vmatprep.subr.mxu0 0.0
    %1831 = vmatpush1.msra.mxu0 0.0
    %1832 = vmatprep.subr.mxu0 0.0
    %1833 = vmatpush1.msra.mxu0 0.0
    %1834 = vmatprep.subr.mxu0 0.0
    %1835 = vmatpush1.msra.mxu0 0.0
    %1836 = vmatprep.subr.mxu0 0.0
    %1837 = vmatpush1.msra.mxu0 0.0
    %1838 = vmatprep.subr.mxu0 0.0
    %1839 = vmatpush1.msra.mxu0 0.0
    %1840 = vmatprep.subr.mxu0 0.0
    %1841 = vmatpush1.msra.mxu0 0.0
    %1842 = vmatprep.subr.mxu0 0.0
    %1843 = vmatpush1.msra.mxu0 0.0
    %1844 = vmatprep.subr.mxu0 0.0
    %1845 = vmatpush1.msra.mxu0 0.0
    %1846 = vmatprep.mubr.f32.mxu0 0.0
    %1847 = vmatmul.mubr.f32.gmra.mrb[0].mxu0 %v1669
    %v1848 = vpop.f32.mrb[0].mxu0
    %v1849 = vadd.f32 %v1774, %v1848
    %v1850 = vpop.f32.mrb[0].mxu0
    %1851 = vmatprep.mubr.f32.mxu0 0.0
    %1852 = vmatmul.mubr.f32.gmra.mrb[0].mxu0 %v1670
    %v1853 = vpop.f32.mrb[0].mxu0
    %v1854 = vadd.f32 %v1779, %v1853
    %v1855 = vpop.f32.mrb[0].mxu0
    %1856 = vdwg.mxu0
    %v1857 = vld [vmem:[#allocation2 + $0x780] sm:$0xff]
    %v1858 = vld [vmem:[#allocation2 + $0x788] sm:$0xff]
    %v1859 = vld [vmem:[#allocation2 + $0x790] sm:$0xff]
    %v1860 = vld [vmem:[#allocation2 + $0x798] sm:$0xff]
    %v1861 = vld [vmem:[#allocation2 + $0x7a0] sm:$0xff]
    %v1862 = vld [vmem:[#allocation2 + $0x7a8] sm:$0xff]
    %v1863 = vld [vmem:[#allocation2 + $0x7b0] sm:$0xff]
    %v1864 = vld [vmem:[#allocation2 + $0x7b8] sm:$0xff]
    %v1865 = vld [vmem:[#allocation2 + $0x7c0] sm:$0xff]
    %v1866 = vld [vmem:[#allocation2 + $0x7c8] sm:$0xff]
    %v1867 = vld [vmem:[#allocation2 + $0x7d0] sm:$0xff]
    %v1868 = vld [vmem:[#allocation2 + $0x7d8] sm:$0xff]
    %v1869 = vld [vmem:[#allocation2 + $0x7e0] sm:$0xff]
    %v1870 = vld [vmem:[#allocation2 + $0x7e8] sm:$0xff]
    %v1871 = vld [vmem:[#allocation2 + $0x7f0] sm:$0xff]
    %v1872 = vld [vmem:[#allocation2 + $0x7f8] sm:$0xff]
    %1873 = vmatprep.subr.mxu0 0.0
    %1874 = vmatpush1.msra.mxu0 %v1857
    %1875 = vmatprep.subr.mxu0 0.0
    %1876 = vmatpush1.msra.mxu0 %v1858
    %1877 = vmatprep.subr.mxu0 0.0
    %1878 = vmatpush1.msra.mxu0 %v1859
    %1879 = vmatprep.subr.mxu0 0.0
    %1880 = vmatpush1.msra.mxu0 %v1860
    %1881 = vmatprep.subr.mxu0 0.0
    %1882 = vmatpush1.msra.mxu0 %v1861
    %1883 = vmatprep.subr.mxu0 0.0
    %1884 = vmatpush1.msra.mxu0 %v1862
    %1885 = vmatprep.subr.mxu0 0.0
    %1886 = vmatpush1.msra.mxu0 %v1863
    %1887 = vmatprep.subr.mxu0 0.0
    %1888 = vmatpush1.msra.mxu0 %v1864
    %1889 = vmatprep.subr.mxu0 0.0
    %1890 = vmatpush1.msra.mxu0 %v1865
    %1891 = vmatprep.subr.mxu0 0.0
    %1892 = vmatpush1.msra.mxu0 %v1866
    %1893 = vmatprep.subr.mxu0 0.0
    %1894 = vmatpush1.msra.mxu0 %v1867
    %1895 = vmatprep.subr.mxu0 0.0
    %1896 = vmatpush1.msra.mxu0 %v1868
    %1897 = vmatprep.subr.mxu0 0.0
    %1898 = vmatpush1.msra.mxu0 %v1869
    %1899 = vmatprep.subr.mxu0 0.0
    %1900 = vmatpush1.msra.mxu0 %v1870
    %1901 = vmatprep.subr.mxu0 0.0
    %1902 = vmatpush1.msra.mxu0 %v1871
    %1903 = vmatprep.subr.mxu0 0.0
    %1904 = vmatpush1.msra.mxu0 %v1872
    %1905 = vmatprep.subr.mxu0 0.0
    %1906 = vmatpush1.msra.mxu0 0.0
    %1907 = vmatprep.subr.mxu0 0.0
    %1908 = vmatpush1.msra.mxu0 0.0
    %1909 = vmatprep.subr.mxu0 0.0
    %1910 = vmatpush1.msra.mxu0 0.0
    %1911 = vmatprep.subr.mxu0 0.0
    %1912 = vmatpush1.msra.mxu0 0.0
    %1913 = vmatprep.subr.mxu0 0.0
    %1914 = vmatpush1.msra.mxu0 0.0
    %1915 = vmatprep.subr.mxu0 0.0
    %1916 = vmatpush1.msra.mxu0 0.0
    %1917 = vmatprep.subr.mxu0 0.0
    %1918 = vmatpush1.msra.mxu0 0.0
    %1919 = vmatprep.subr.mxu0 0.0
    %1920 = vmatpush1.msra.mxu0 0.0
    %1921 = vmatprep.subr.mxu0 0.0
    %1922 = vmatpush1.msra.mxu0 0.0
    %1923 = vmatprep.subr.mxu0 0.0
    %1924 = vmatpush1.msra.mxu0 0.0
    %1925 = vmatprep.subr.mxu0 0.0
    %1926 = vmatpush1.msra.mxu0 0.0
    %1927 = vmatprep.subr.mxu0 0.0
    %1928 = vmatpush1.msra.mxu0 0.0
    %1929 = vmatprep.subr.mxu0 0.0
    %1930 = vmatpush1.msra.mxu0 0.0
    %1931 = vmatprep.subr.mxu0 0.0
    %1932 = vmatpush1.msra.mxu0 0.0
    %1933 = vmatprep.subr.mxu0 0.0
    %1934 = vmatpush1.msra.mxu0 0.0
    %1935 = vmatprep.subr.mxu0 0.0
    %1936 = vmatpush1.msra.mxu0 0.0
    %1937 = vmatprep.mubr.f32.mxu0 0.0
    %1938 = vmatmul.mubr.f32.gmra.mrb[0].mxu0 %v1673
    %v1939 = vpop.f32.mrb[0].mxu0
    %v1940 = vadd.f32 0.0, %v1939
    %v1941 = vpop.f32.mrb[0].mxu0
    %1942 = vmatprep.mubr.f32.mxu0 0.0
    %1943 = vmatmul.mubr.f32.gmra.mrb[0].mxu0 %v1674
    %v1944 = vpop.f32.mrb[0].mxu0
    %v1945 = vadd.f32 0.0, %v1944
    %v1946 = vpop.f32.mrb[0].mxu0
    %1947 = vdwg.mxu0
    %v1948 = vadd.f32 %v1849, %v1940
    %v1949 = vadd.f32 %v1854, %v1945
    %v1950 = vld [vmem:[#allocation2 + $0x9d8] sm:$0x1]
    %v1951 = vlaneseq
    %v1952 = vshrl.u32 %v1951, 7
    %v1953 = vsub.s32 0, %v1952
    %v1954 = vrot.slane %v1950, %v1953
    %v1955 = vadd.f32 %v1948, %v1954
    %v1956 = vadd.f32 %v1949, %v1954
    %v1957 = vmax.f32 %v1955, 0.0
    %v1958 = vmax.f32 %v1956, 0.0
    %v1959 = vld [vmem:[#allocation2 + $0x800] sm:$0xff]
    %v1960 = vld [vmem:[#allocation2 + $0x808] sm:$0xff]
    %v1961 = vld [vmem:[#allocation2 + $0x810] sm:$0xff]
    %v1962 = vld [vmem:[#allocation2 + $0x818] sm:$0xff]
    %v1963 = vld [vmem:[#allocation2 + $0x820] sm:$0xff]
    %v1964 = vld [vmem:[#allocation2 + $0x828] sm:$0xff]
    %v1965 = vld [vmem:[#allocation2 + $0x830] sm:$0xff]
    %v1966 = vld [vmem:[#allocation2 + $0x838] sm:$0xff]
    %v1967 = vld [vmem:[#allocation2 + $0x840] sm:$0xff]
    %v1968 = vld [vmem:[#allocation2 + $0x848] sm:$0xff]
    %v1969 = vld [vmem:[#allocation2 + $0x850] sm:$0xff]
    %v1970 = vld [vmem:[#allocation2 + $0x858] sm:$0xff]
    %v1971 = vld [vmem:[#allocation2 + $0x860] sm:$0xff]
    %v1972 = vld [vmem:[#allocation2 + $0x868] sm:$0xff]
    %v1973 = vld [vmem:[#allocation2 + $0x870] sm:$0xff]
    %v1974 = vld [vmem:[#allocation2 + $0x878] sm:$0xff]
    %v1975 = vld [vmem:[#allocation2 + $0x9e0] sm:$0x1]
    %v1976 = vlaneseq
    %v1977 = vshrl.u32 %v1976, 7
    %v1978 = vsub.s32 0, %v1977
    %v1979 = vrot.slane %v1975, %v1978
    %1980 = vmatprep.subr.mxu0 0.0
    %1981 = vmatpush1.msra.mxu0 %v1959
    %1982 = vmatprep.subr.mxu0 0.0
    %1983 = vmatpush1.msra.mxu0 %v1960
    %1984 = vmatprep.subr.mxu0 0.0
    %1985 = vmatpush1.msra.mxu0 %v1961
    %1986 = vmatprep.subr.mxu0 0.0
    %1987 = vmatpush1.msra.mxu0 %v1962
    %1988 = vmatprep.subr.mxu0 0.0
    %1989 = vmatpush1.msra.mxu0 %v1963
    %1990 = vmatprep.subr.mxu0 0.0
    %1991 = vmatpush1.msra.mxu0 %v1964
    %1992 = vmatprep.subr.mxu0 0.0
    %1993 = vmatpush1.msra.mxu0 %v1965
    %1994 = vmatprep.subr.mxu0 0.0
    %1995 = vmatpush1.msra.mxu0 %v1966
    %1996 = vmatprep.subr.mxu0 0.0
    %1997 = vmatpush1.msra.mxu0 %v1967
    %1998 = vmatprep.subr.mxu0 0.0
    %1999 = vmatpush1.msra.mxu0 %v1968
    %2000 = vmatprep.subr.mxu0 0.0
    %2001 = vmatpush1.msra.mxu0 %v1969
    %2002 = vmatprep.subr.mxu0 0.0
    %2003 = vmatpush1.msra.mxu0 %v1970
    %2004 = vmatprep.subr.mxu0 0.0
    %2005 = vmatpush1.msra.mxu0 %v1971
    %2006 = vmatprep.subr.mxu0 0.0
    %2007 = vmatpush1.msra.mxu0 %v1972
    %2008 = vmatprep.subr.mxu0 0.0
    %2009 = vmatpush1.msra.mxu0 %v1973
    %2010 = vmatprep.subr.mxu0 0.0
    %2011 = vmatpush1.msra.mxu0 %v1974
    %2012 = vmatprep.subr.mxu0 0.0
    %2013 = vmatpush1.msra.mxu0 0.0
    %2014 = vmatprep.subr.mxu0 0.0
    %2015 = vmatpush1.msra.mxu0 0.0
    %2016 = vmatprep.subr.mxu0 0.0
    %2017 = vmatpush1.msra.mxu0 0.0
    %2018 = vmatprep.subr.mxu0 0.0
    %2019 = vmatpush1.msra.mxu0 0.0
    %2020 = vmatprep.subr.mxu0 0.0
    %2021 = vmatpush1.msra.mxu0 0.0
    %2022 = vmatprep.subr.mxu0 0.0
    %2023 = vmatpush1.msra.mxu0 0.0
    %2024 = vmatprep.subr.mxu0 0.0
    %2025 = vmatpush1.msra.mxu0 0.0
    %2026 = vmatprep.subr.mxu0 0.0
    %2027 = vmatpush1.msra.mxu0 0.0
    %2028 = vmatprep.subr.mxu0 0.0
    %2029 = vmatpush1.msra.mxu0 0.0
    %2030 = vmatprep.subr.mxu0 0.0
    %2031 = vmatpush1.msra.mxu0 0.0
    %2032 = vmatprep.subr.mxu0 0.0
    %2033 = vmatpush1.msra.mxu0 0.0
    %2034 = vmatprep.subr.mxu0 0.0
    %2035 = vmatpush1.msra.mxu0 0.0
    %2036 = vmatprep.subr.mxu0 0.0
    %2037 = vmatpush1.msra.mxu0 0.0
    %2038 = vmatprep.subr.mxu0 0.0
    %2039 = vmatpush1.msra.mxu0 0.0
    %2040 = vmatprep.subr.mxu0 0.0
    %2041 = vmatpush1.msra.mxu0 0.0
    %2042 = vmatprep.subr.mxu0 0.0
    %2043 = vmatpush1.msra.mxu0 0.0
    %2044 = vmatprep.mubr.f32.mxu0 0.0
    %2045 = vmatmul.mubr.f32.gmra.mrb[0].mxu0 %v1957
    %v2046 = vpop.f32.mrb[0].mxu0
    %v2047 = vadd.f32 %v1979, %v2046
    %v2048 = vpop.f32.mrb[0].mxu0
    %2049 = vmatprep.mubr.f32.mxu0 0.0
    %2050 = vmatmul.mubr.f32.gmra.mrb[0].mxu0 %v1958
    %v2051 = vpop.f32.mrb[0].mxu0
    %v2052 = vadd.f32 %v1979, %v2051
    %v2053 = vpop.f32.mrb[0].mxu0
    %2054 = vdwg.mxu0
    %v2055 = vmax.f32 %v2047, 0.0
    %v2056 = vmax.f32 %v2052, 0.0
    %v2057 = vld [vmem:[#allocation2 + $0x880] sm:$0xff]
    %v2058 = vld [vmem:[#allocation2 + $0x888] sm:$0xff]
    %v2059 = vld [vmem:[#allocation2 + $0x890] sm:$0xff]
    %v2060 = vld [vmem:[#allocation2 + $0x898] sm:$0xff]
    %v2061 = vld [vmem:[#allocation2 + $0x8a0] sm:$0xff]
    %v2062 = vld [vmem:[#allocation2 + $0x8a8] sm:$0xff]
    %v2063 = vld [vmem:[#allocation2 + $0x8b0] sm:$0xff]
    %v2064 = vld [vmem:[#allocation2 + $0x8b8] sm:$0xff]
    %v2065 = vld [vmem:[#allocation2 + $0x8c0] sm:$0xff]
    %v2066 = vld [vmem:[#allocation2 + $0x8c8] sm:$0xff]
    %v2067 = vld [vmem:[#allocation2 + $0x8d0] sm:$0xff]
    %v2068 = vld [vmem:[#allocation2 + $0x8d8] sm:$0xff]
    %v2069 = vld [vmem:[#allocation2 + $0x8e0] sm:$0xff]
    %v2070 = vld [vmem:[#allocation2 + $0x8e8] sm:$0xff]
    %v2071 = vld [vmem:[#allocation2 + $0x8f0] sm:$0xff]
    %v2072 = vld [vmem:[#allocation2 + $0x8f8] sm:$0xff]
    %v2073 = vld [vmem:[#allocation2 + $0x9e8] sm:$0x1]
    %v2074 = vlaneseq
    %v2075 = vshrl.u32 %v2074, 7
    %v2076 = vsub.s32 0, %v2075
    %v2077 = vrot.slane %v2073, %v2076
    %2078 = vmatprep.subr.mxu0 0.0
    %2079 = vmatpush1.msra.mxu0 %v2057
    %2080 = vmatprep.subr.mxu0 0.0
    %2081 = vmatpush1.msra.mxu0 %v2058
    %2082 = vmatprep.subr.mxu0 0.0
    %2083 = vmatpush1.msra.mxu0 %v2059
    %2084 = vmatprep.subr.mxu0 0.0
    %2085 = vmatpush1.msra.mxu0 %v2060
    %2086 = vmatprep.subr.mxu0 0.0
    %2087 = vmatpush1.msra.mxu0 %v2061
    %2088 = vmatprep.subr.mxu0 0.0
    %2089 = vmatpush1.msra.mxu0 %v2062
    %2090 = vmatprep.subr.mxu0 0.0
    %2091 = vmatpush1.msra.mxu0 %v2063
    %2092 = vmatprep.subr.mxu0 0.0
    %2093 = vmatpush1.msra.mxu0 %v2064
    %2094 = vmatprep.subr.mxu0 0.0
    %2095 = vmatpush1.msra.mxu0 %v2065
    %2096 = vmatprep.subr.mxu0 0.0
    %2097 = vmatpush1.msra.mxu0 %v2066
    %2098 = vmatprep.subr.mxu0 0.0
    %2099 = vmatpush1.msra.mxu0 %v2067
    %2100 = vmatprep.subr.mxu0 0.0
    %2101 = vmatpush1.msra.mxu0 %v2068
    %2102 = vmatprep.subr.mxu0 0.0
    %2103 = vmatpush1.msra.mxu0 %v2069
    %2104 = vmatprep.subr.mxu0 0.0
    %2105 = vmatpush1.msra.mxu0 %v2070
    %2106 = vmatprep.subr.mxu0 0.0
    %2107 = vmatpush1.msra.mxu0 %v2071
    %2108 = vmatprep.subr.mxu0 0.0
    %2109 = vmatpush1.msra.mxu0 %v2072
    %2110 = vmatprep.subr.mxu0 0.0
    %2111 = vmatpush1.msra.mxu0 0.0
    %2112 = vmatprep.subr.mxu0 0.0
    %2113 = vmatpush1.msra.mxu0 0.0
    %2114 = vmatprep.subr.mxu0 0.0
    %2115 = vmatpush1.msra.mxu0 0.0
    %2116 = vmatprep.subr.mxu0 0.0
    %2117 = vmatpush1.msra.mxu0 0.0
    %2118 = vmatprep.subr.mxu0 0.0
    %2119 = vmatpush1.msra.mxu0 0.0
    %2120 = vmatprep.subr.mxu0 0.0
    %2121 = vmatpush1.msra.mxu0 0.0
    %2122 = vmatprep.subr.mxu0 0.0
    %2123 = vmatpush1.msra.mxu0 0.0
    %2124 = vmatprep.subr.mxu0 0.0
    %2125 = vmatpush1.msra.mxu0 0.0
    %2126 = vmatprep.subr.mxu0 0.0
    %2127 = vmatpush1.msra.mxu0 0.0
    %2128 = vmatprep.subr.mxu0 0.0
    %2129 = vmatpush1.msra.mxu0 0.0
    %2130 = vmatprep.subr.mxu0 0.0
    %2131 = vmatpush1.msra.mxu0 0.0
    %2132 = vmatprep.subr.mxu0 0.0
    %2133 = vmatpush1.msra.mxu0 0.0
    %2134 = vmatprep.subr.mxu0 0.0
    %2135 = vmatpush1.msra.mxu0 0.0
    %2136 = vmatprep.subr.mxu0 0.0
    %2137 = vmatpush1.msra.mxu0 0.0
    %2138 = vmatprep.subr.mxu0 0.0
    %2139 = vmatpush1.msra.mxu0 0.0
    %2140 = vmatprep.subr.mxu0 0.0
    %2141 = vmatpush1.msra.mxu0 0.0
    %2142 = vmatprep.mubr.f32.mxu0 0.0
    %2143 = vmatmul.mubr.f32.gmra.mrb[0].mxu0 %v2055
    %v2144 = vpop.f32.mrb[0].mxu0
    %v2145 = vadd.f32 %v2077, %v2144
    %v2146 = vpop.f32.mrb[0].mxu0
    %2147 = vmatprep.mubr.f32.mxu0 0.0
    %2148 = vmatmul.mubr.f32.gmra.mrb[0].mxu0 %v2056
    %v2149 = vpop.f32.mrb[0].mxu0
    %v2150 = vadd.f32 %v2077, %v2149
    %v2151 = vpop.f32.mrb[0].mxu0
    %2152 = vdwg.mxu0
    %v2153 = vmax.f32 %v2145, 0.0
    %v2154 = vmax.f32 %v2150, 0.0
    %v2155 = vld [vmem:[#allocation2 + $0x900] sm:$0xff]
    %v2156 = vld [vmem:[#allocation2 + $0x908] sm:$0xff]
    %v2157 = vld [vmem:[#allocation2 + $0x910] sm:$0xff]
    %v2158 = vld [vmem:[#allocation2 + $0x918] sm:$0xff]
    %v2159 = vld [vmem:[#allocation2 + $0x920] sm:$0xff]
    %v2160 = vld [vmem:[#allocation2 + $0x928] sm:$0xff]
    %v2161 = vld [vmem:[#allocation2 + $0x930] sm:$0xff]
    %v2162 = vld [vmem:[#allocation2 + $0x938] sm:$0xff]
    %v2163 = vld [vmem:[#allocation2 + $0x940] sm:$0xff]
    %v2164 = vld [vmem:[#allocation2 + $0x948] sm:$0xff]
    %v2165 = vld [vmem:[#allocation2 + $0x950] sm:$0xff]
    %v2166 = vld [vmem:[#allocation2 + $0x958] sm:$0xff]
    %v2167 = vld [vmem:[#allocation2 + $0x960] sm:$0xff]
    %v2168 = vld [vmem:[#allocation2 + $0x968] sm:$0xff]
    %v2169 = vld [vmem:[#allocation2 + $0x970] sm:$0xff]
    %v2170 = vld [vmem:[#allocation2 + $0x978] sm:$0xff]
    %v2171 = vld [vmem:[#allocation2 + $0x9f0] sm:$0x1]
    %v2172 = vlaneseq
    %v2173 = vshrl.u32 %v2172, 7
    %v2174 = vsub.s32 0, %v2173
    %v2175 = vrot.slane %v2171, %v2174
    %2176 = vmatprep.subr.mxu0 0.0
    %2177 = vmatpush1.msra.mxu0 %v2155
    %2178 = vmatprep.subr.mxu0 0.0
    %2179 = vmatpush1.msra.mxu0 %v2156
    %2180 = vmatprep.subr.mxu0 0.0
    %2181 = vmatpush1.msra.mxu0 %v2157
    %2182 = vmatprep.subr.mxu0 0.0
    %2183 = vmatpush1.msra.mxu0 %v2158
    %2184 = vmatprep.subr.mxu0 0.0
    %2185 = vmatpush1.msra.mxu0 %v2159
    %2186 = vmatprep.subr.mxu0 0.0
    %2187 = vmatpush1.msra.mxu0 %v2160
    %2188 = vmatprep.subr.mxu0 0.0
    %2189 = vmatpush1.msra.mxu0 %v2161
    %2190 = vmatprep.subr.mxu0 0.0
    %2191 = vmatpush1.msra.mxu0 %v2162
    %2192 = vmatprep.subr.mxu0 0.0
    %2193 = vmatpush1.msra.mxu0 %v2163
    %2194 = vmatprep.subr.mxu0 0.0
    %2195 = vmatpush1.msra.mxu0 %v2164
    %2196 = vmatprep.subr.mxu0 0.0
    %2197 = vmatpush1.msra.mxu0 %v2165
    %2198 = vmatprep.subr.mxu0 0.0
    %2199 = vmatpush1.msra.mxu0 %v2166
    %2200 = vmatprep.subr.mxu0 0.0
    %2201 = vmatpush1.msra.mxu0 %v2167
    %2202 = vmatprep.subr.mxu0 0.0
    %2203 = vmatpush1.msra.mxu0 %v2168
    %2204 = vmatprep.subr.mxu0 0.0
    %2205 = vmatpush1.msra.mxu0 %v2169
    %2206 = vmatprep.subr.mxu0 0.0
    %2207 = vmatpush1.msra.mxu0 %v2170
    %2208 = vmatprep.subr.mxu0 0.0
    %2209 = vmatpush1.msra.mxu0 0.0
    %2210 = vmatprep.subr.mxu0 0.0
    %2211 = vmatpush1.msra.mxu0 0.0
    %2212 = vmatprep.subr.mxu0 0.0
    %2213 = vmatpush1.msra.mxu0 0.0
    %2214 = vmatprep.subr.mxu0 0.0
    %2215 = vmatpush1.msra.mxu0 0.0
    %2216 = vmatprep.subr.mxu0 0.0
    %2217 = vmatpush1.msra.mxu0 0.0
    %2218 = vmatprep.subr.mxu0 0.0
    %2219 = vmatpush1.msra.mxu0 0.0
    %2220 = vmatprep.subr.mxu0 0.0
    %2221 = vmatpush1.msra.mxu0 0.0
    %2222 = vmatprep.subr.mxu0 0.0
    %2223 = vmatpush1.msra.mxu0 0.0
    %2224 = vmatprep.subr.mxu0 0.0
    %2225 = vmatpush1.msra.mxu0 0.0
    %2226 = vmatprep.subr.mxu0 0.0
    %2227 = vmatpush1.msra.mxu0 0.0
    %2228 = vmatprep.subr.mxu0 0.0
    %2229 = vmatpush1.msra.mxu0 0.0
    %2230 = vmatprep.subr.mxu0 0.0
    %2231 = vmatpush1.msra.mxu0 0.0
    %2232 = vmatprep.subr.mxu0 0.0
    %2233 = vmatpush1.msra.mxu0 0.0
    %2234 = vmatprep.subr.mxu0 0.0
    %2235 = vmatpush1.msra.mxu0 0.0
    %2236 = vmatprep.subr.mxu0 0.0
    %2237 = vmatpush1.msra.mxu0 0.0
    %2238 = vmatprep.subr.mxu0 0.0
    %2239 = vmatpush1.msra.mxu0 0.0
    %2240 = vmatprep.mubr.f32.mxu0 0.0
    %2241 = vmatmul.mubr.f32.gmra.mrb[0].mxu0 %v2153
    %v2242 = vpop.f32.mrb[0].mxu0
    %v2243 = vadd.f32 %v2175, %v2242
    %v2244 = vpop.f32.mrb[0].mxu0
    %2245 = vmatprep.mubr.f32.mxu0 0.0
    %2246 = vmatmul.mubr.f32.gmra.mrb[0].mxu0 %v2154
    %v2247 = vpop.f32.mrb[0].mxu0
    %v2248 = vadd.f32 %v2175, %v2247
    %v2249 = vpop.f32.mrb[0].mxu0
    %2250 = vdwg.mxu0
    %2251 = vst [vmem:[%s2] sm:$0xff] %v2243
    %2252 = vst [vmem:[%s2 + $0x8] sm:$0xff] %v2248
    // Predicated region
    $region14: #{prekg_forward.1} parent=1 // pred_check
      _
    $region15: #{prekg_forward.1} parent=1 // pred_check_branch
      %2254 = sbr.rel (0) target = $region17
    $region16: #{prekg_forward.1} parent=1 // pred_region
      _
    $region17: #{prekg_forward.1} parent=1 // pred_fallthru
      _
    // Predicated region
    $region18: #{prekg_forward.1} parent=1 // pred_check
      _
    $region19: #{prekg_forward.1} parent=1 // pred_check_branch
      %2256 = sbr.rel (0) target = $region21
    $region20: #{prekg_forward.1} parent=1 // pred_region
      _
    $region21: #{prekg_forward.1} parent=1 // pred_fallthru
      _
    %2257 = vsyncpa [#allocation3], 1

</llo_original>
